<compile_context>
chip_gen: v5e
topology: v5e:2x2
jax: 0.10.0
libtpu: 0.0.40
codegen_flags: <defaults>
</compile_context>

<pallas_src>
import jax
import jax.numpy as jnp
from jax import lax
from jax.experimental import pallas as pl
from jax.experimental.pallas import tpu as pltpu

_LANE = 128


def _round_up(x, m):
    return (x + m - 1) // m * m


# ----------------------------------------------------------------------------
# Kernel
# ----------------------------------------------------------------------------
def _make_conv_bn_kernel(ks, stride, th, wo, cin, cpad):
    """Fused k*k conv (tap-wise bf16 MXU matmuls, f32 accumulation) + folded BN."""

    def kernel(xpad_ref, w_ref, scale_ref, shift_ref, out_ref):
        # xpad_ref    : (Hp, Wp, cin)     full spatially-padded image of batch n
        # w_ref       : (ks, ks, cin, cpad) conv weight (cout zero-padded to cpad)
        # scale/shift : (1, cpad)          folded BatchNorm
        # out_ref     : (th, wo, cpad)     one output row-strip
        h_tile = pl.program_id(1)
        row0 = pl.multiple_of(h_tile * (th * stride), th * stride)

        acc = jnp.zeros((th * wo, cpad), jnp.float32)
        for ky in range(ks):
            for kx in range(ks):
                if stride == 1:
                    tap = xpad_ref[pl.ds(row0 + ky, th), pl.ds(kx, wo), :]
                else:
                    # Only the strided output positions are read/accumulated.
                    # TODO(synk): stride>1 tap path not exercised by the demo
                    # (module default stride=1); validate before relying on it.
                    tap = xpad_ref[pl.ds(row0 + ky, th, stride),
                                   pl.ds(kx, wo, stride), :]
                lhs = tap.reshape(th * wo, cin).astype(jnp.bfloat16)
                rhs = w_ref[ky, kx].astype(jnp.bfloat16)
                acc = acc + jnp.dot(lhs, rhs,
                                    preferred_element_type=jnp.float32)

        # Folded BatchNorm (inference running stats).  No ReLU: the reference
        # forward is conv -> bn only.
        z = acc * scale_ref[...] + shift_ref[...]
        out_ref[...] = z.reshape(th, wo, cpad).astype(out_ref.dtype)

    return kernel


# ----------------------------------------------------------------------------
# Wrapper (NCHW in / NCHW out, like the PyTorch module)
# ----------------------------------------------------------------------------
def conv_bn_forward(x_nchw, params, *, stride=1, padding=1):
    w = params["w"]                                   # (cout, cin, ks, ks)
    cout, cin, ks, _ = w.shape
    eps = params.get("eps", 1e-5)

    n, _, h, w_in = x_nchw.shape
    ho = (h + 2 * padding - ks) // stride + 1
    wo = (w_in + 2 * padding - ks) // stride + 1
    cpad = _round_up(cout, _LANE)                     # lane-dense channel dim

    # ---- fold BN (and an optional conv bias) into scale/shift; pad channels
    scale = params["gamma"] * lax.rsqrt(params["var"] + eps)
    shift = params["beta"] - params["mean"] * scale
    if params.get("b") is not None:
        shift = shift + params["b"] * scale
    scale = jnp.pad(scale, (0, cpad - cout)).reshape(1, cpad).astype(jnp.float32)
    shift = jnp.pad(shift, (0, cpad - cout)).reshape(1, cpad).astype(jnp.float32)

    # (cout,cin,kh,kw) -> (kh,kw,cin,cpad), zero-padded output channels
    w_hwio = jnp.pad(jnp.transpose(w, (2, 3, 1, 0)),
                     ((0, 0), (0, 0), (0, 0), (0, cpad - cout))).astype(jnp.float32)

    # NCHW -> NHWC + spatial halo pad (single pad of the raw input)
    x = jnp.transpose(x_nchw, (0, 2, 3, 1)).astype(jnp.float32)
    xpad = jnp.pad(x, ((0, 0), (padding, padding), (padding, padding), (0, 0)))
    hp, wp = xpad.shape[1], xpad.shape[2]

    # Output row-strip size: keeps the live accumulator small and gives the
    # grid parallel extent for megacore.
    th = next(t for t in (8, 4, 2, 1) if ho % t == 0)
    grid = (n, ho // th)

    kernel = _make_conv_bn_kernel(ks, stride, th, wo, cin, cpad)

    out = pl.pallas_call(
        kernel,
        out_shape=jax.ShapeDtypeStruct((n, ho, wo, cpad), jnp.float32),
        grid_spec=pltpu.PrefetchScalarGridSpec(
            num_scalar_prefetch=0,
            grid=grid,
            in_specs=[
                # Whole padded image per batch element; block index is constant
                # across the strip axis -> DMA'd only once per n.
                pl.BlockSpec((pl.Squeezed(), hp, wp, cin),
                             lambda nb, hb: (nb, 0, 0, 0)),
                pl.BlockSpec((ks, ks, cin, cpad), lambda nb, hb: (0, 0, 0, 0)),
                pl.BlockSpec((1, cpad), lambda nb, hb: (0, 0)),
                pl.BlockSpec((1, cpad), lambda nb, hb: (0, 0)),
            ],
            out_specs=pl.BlockSpec((pl.Squeezed(), th, wo, cpad),
                                   lambda nb, hb: (nb, hb, 0, 0)),
        ),
        compiler_params=pltpu.CompilerParams(
            dimension_semantics=("parallel", "parallel"),
            vmem_limit_bytes=48 * 1024 * 1024),
    )(xpad, w_hwio, scale, shift)

    # Drop the channel padding, back to NCHW.
    return jnp.transpose(out[..., :cout], (0, 3, 1, 2))


# ----------------------------------------------------------------------------
# Parameters (matches ConvBNReLU.init_weight: kaiming_normal_(a=1), bias=False)
# ----------------------------------------------------------------------------
def init_conv_bn_params(key, in_chan, out_chan, ks=3, eps=1e-5):
    kw_, kg, kb, km, kv = jax.random.split(key, 5)
    fan_in = in_chan * ks * ks
    # kaiming_normal_(a=1): gain = sqrt(2/(1+a^2)) = 1 -> std = 1/sqrt(fan_in)
    w = jax.random.normal(kw_, (out_chan, in_chan, ks, ks),
                          jnp.float32) / jnp.sqrt(float(fan_in))
    # randomized BN stats so the folded-BN path is actually exercised
    gamma = 1.0 + 0.1 * jax.random.normal(kg, (out_chan,), jnp.float32)
    beta = 0.1 * jax.random.normal(kb, (out_chan,), jnp.float32)
    mean = 0.1 * jax.random.normal(km, (out_chan,), jnp.float32)
    var = jax.random.uniform(kv, (out_chan,), jnp.float32, 0.5, 1.5)
    return dict(w=w, b=None, gamma=gamma, beta=beta, mean=mean, var=var, eps=eps)


# ----------------------------------------------------------------------------
# Pure-JAX reference (validation only).  Mirrors the kernel's bf16 MXU inputs
# (with f32 accumulation) so the check can use a tight tolerance.
# ----------------------------------------------------------------------------
def conv_bn_reference(x_nchw, params, *, stride=1, padding=1):
    eps = params.get("eps", 1e-5)
    x = x_nchw.astype(jnp.bfloat16).astype(jnp.float32)
    w = params["w"].astype(jnp.bfloat16).astype(jnp.float32)
    y = lax.conv_general_dilated(
        x, w, window_strides=(stride, stride),
        padding=[(padding, padding), (padding, padding)],
        dimension_numbers=("NCHW", "OIHW", "NCHW"))
    scale = params["gamma"] * lax.rsqrt(params["var"] + eps)
    shift = params["beta"] - params["mean"] * scale
    if params.get("b") is not None:
        shift = shift + params["b"] * scale
    return y * scale[None, :, None, None] + shift[None, :, None, None]


# ----------------------------------------------------------------------------
if __name__ == "__main__":
    key = jax.random.PRNGKey(0)
    kx, kp = jax.random.split(key)
    n, in_chan, out_chan, h, w = 2, 4, 8, 16, 16
    ks, stride, padding = 3, 1, 1

    x = jax.random.normal(kx, (n, in_chan, h, w), jnp.float32)   # NCHW input
    params = init_conv_bn_params(kp, in_chan, out_chan, ks=ks)

    out = jax.block_until_ready(
        conv_bn_forward(x, params, stride=stride, padding=padding))
    ref = jax.block_until_ready(
        conv_bn_reference(x, params, stride=stride, padding=padding))

    assert out.shape == (n, out_chan, h, w), out.shape
    max_err = float(jnp.max(jnp.abs(out - ref)))
    assert jnp.allclose(out, ref, rtol=1e-3, atol=1e-3), max_err
    print("KERNEL_OK")
</pallas_src>

<mosaic_0001>
module attributes {stable_mosaic.version = 11 : i64} {
  func.func @kernel(%arg0: i32, %arg1: i32, %arg2: memref<1x18x18x4xf32, #tpu.memory_space<vmem>>, %arg3: memref<3x3x4x128xf32, #tpu.memory_space<vmem>>, %arg4: memref<1x128xf32, #tpu.memory_space<vmem>>, %arg5: memref<1x128xf32, #tpu.memory_space<vmem>>, %arg6: memref<1x8x16x128xf32, #tpu.memory_space<vmem>>) attributes {dimension_semantics = [#tpu.dimension_semantics<parallel>, #tpu.dimension_semantics<parallel>], iteration_bounds = array<i64: 2, 2>, scalar_prefetch = 0 : i64, scratch_operands = 0 : i64, tpu.core_type = #tpu.core_type<tc>, window_params = [{transform_indices = @transform_0, window_bounds = array<i64: 1, 18, 18, 4>}, {pipeline_mode = #tpu.pipeline_mode<synchronous>, transform_indices = @transform_1, window_bounds = array<i64: 3, 3, 4, 128>}, {pipeline_mode = #tpu.pipeline_mode<synchronous>, transform_indices = @transform_2, window_bounds = array<i64: 1, 128>}, {pipeline_mode = #tpu.pipeline_mode<synchronous>, transform_indices = @transform_3, window_bounds = array<i64: 1, 128>}, {transform_indices = @transform_4, window_bounds = array<i64: 1, 8, 16, 128>}]} {
    %c8_i32 = arith.constant 8 : i32
    %0 = arith.muli %arg1, %c8_i32 : i32
    %1 = tpu.assume_multiple %0, 8 : i32
    %cst = arith.constant 0.000000e+00 : f32
    %2 = vector.broadcast %cst : f32 to vector<128x128xf32>
    %c0_i32 = arith.constant 0 : i32
    %3 = arith.addi %1, %c0_i32 : i32
    %c0 = arith.constant 0 : index
    %4 = arith.index_cast %3 : i32 to index
    %c0_0 = arith.constant 0 : index
    %c0_1 = arith.constant 0 : index
    %5 = vector.load %arg2[%c0, %4, %c0_0, %c0_1] : memref<1x18x18x4xf32, #tpu.memory_space<vmem>>, vector<1x8x16x4xf32>
    %6 = vector.shape_cast %5 : vector<1x8x16x4xf32> to vector<8x16x4xf32>
    %7 = vector.shape_cast %6 : vector<8x16x4xf32> to vector<128x4xf32>
    %8 = arith.truncf %7 : vector<128x4xf32> to vector<128x4xbf16>
    %c0_2 = arith.constant 0 : index
    %c0_3 = arith.constant 0 : index
    %c0_4 = arith.constant 0 : index
    %c0_5 = arith.constant 0 : index
    %9 = vector.load %arg3[%c0_2, %c0_3, %c0_4, %c0_5] : memref<3x3x4x128xf32, #tpu.memory_space<vmem>>, vector<1x1x4x128xf32>
    %10 = vector.shape_cast %9 : vector<1x1x4x128xf32> to vector<4x128xf32>
    %11 = arith.truncf %10 : vector<4x128xf32> to vector<4x128xbf16>
    %cst_6 = arith.constant dense<0.000000e+00> : vector<128x128xf32>
    %12 = tpu.matmul %8, %11, %cst_6 {dimension_numbers = #tpu.dot_dimension_numbers<[1], [0], [0], [1], [0, 0, 1, 1], [], []>} : vector<128x4xbf16>, vector<4x128xbf16>, vector<128x128xf32> -> vector<128x128xf32>
    %13 = arith.addf %2, %12 : vector<128x128xf32>
    %c0_i32_7 = arith.constant 0 : i32
    %14 = arith.addi %1, %c0_i32_7 : i32
    %c0_8 = arith.constant 0 : index
    %15 = arith.index_cast %14 : i32 to index
    %c1 = arith.constant 1 : index
    %c0_9 = arith.constant 0 : index
    %16 = vector.load %arg2[%c0_8, %15, %c1, %c0_9] : memref<1x18x18x4xf32, #tpu.memory_space<vmem>>, vector<1x8x16x4xf32>
    %17 = vector.shape_cast %16 : vector<1x8x16x4xf32> to vector<8x16x4xf32>
    %18 = vector.shape_cast %17 : vector<8x16x4xf32> to vector<128x4xf32>
    %19 = arith.truncf %18 : vector<128x4xf32> to vector<128x4xbf16>
    %c0_10 = arith.constant 0 : index
    %c1_11 = arith.constant 1 : index
    %c0_12 = arith.constant 0 : index
    %c0_13 = arith.constant 0 : index
    %20 = vector.load %arg3[%c0_10, %c1_11, %c0_12, %c0_13] : memref<3x3x4x128xf32, #tpu.memory_space<vmem>>, vector<1x1x4x128xf32>
    %21 = vector.shape_cast %20 : vector<1x1x4x128xf32> to vector<4x128xf32>
    %22 = arith.truncf %21 : vector<4x128xf32> to vector<4x128xbf16>
    %cst_14 = arith.constant dense<0.000000e+00> : vector<128x128xf32>
    %23 = tpu.matmul %19, %22, %cst_14 {dimension_numbers = #tpu.dot_dimension_numbers<[1], [0], [0], [1], [0, 0, 1, 1], [], []>} : vector<128x4xbf16>, vector<4x128xbf16>, vector<128x128xf32> -> vector<128x128xf32>
    %24 = arith.addf %13, %23 : vector<128x128xf32>
    %c0_i32_15 = arith.constant 0 : i32
    %25 = arith.addi %1, %c0_i32_15 : i32
    %c0_16 = arith.constant 0 : index
    %26 = arith.index_cast %25 : i32 to index
    %c2 = arith.constant 2 : index
    %c0_17 = arith.constant 0 : index
    %27 = vector.load %arg2[%c0_16, %26, %c2, %c0_17] : memref<1x18x18x4xf32, #tpu.memory_space<vmem>>, vector<1x8x16x4xf32>
    %28 = vector.shape_cast %27 : vector<1x8x16x4xf32> to vector<8x16x4xf32>
    %29 = vector.shape_cast %28 : vector<8x16x4xf32> to vector<128x4xf32>
    %30 = arith.truncf %29 : vector<128x4xf32> to vector<128x4xbf16>
    %c0_18 = arith.constant 0 : index
    %c2_19 = arith.constant 2 : index
    %c0_20 = arith.constant 0 : index
    %c0_21 = arith.constant 0 : index
    %31 = vector.load %arg3[%c0_18, %c2_19, %c0_20, %c0_21] : memref<3x3x4x128xf32, #tpu.memory_space<vmem>>, vector<1x1x4x128xf32>
    %32 = vector.shape_cast %31 : vector<1x1x4x128xf32> to vector<4x128xf32>
    %33 = arith.truncf %32 : vector<4x128xf32> to vector<4x128xbf16>
    %cst_22 = arith.constant dense<0.000000e+00> : vector<128x128xf32>
    %34 = tpu.matmul %30, %33, %cst_22 {dimension_numbers = #tpu.dot_dimension_numbers<[1], [0], [0], [1], [0, 0, 1, 1], [], []>} : vector<128x4xbf16>, vector<4x128xbf16>, vector<128x128xf32> -> vector<128x128xf32>
    %35 = arith.addf %24, %34 : vector<128x128xf32>
    %c1_i32 = arith.constant 1 : i32
    %36 = arith.addi %1, %c1_i32 : i32
    %c0_23 = arith.constant 0 : index
    %37 = arith.index_cast %36 : i32 to index
    %c0_24 = arith.constant 0 : index
    %c0_25 = arith.constant 0 : index
    %38 = vector.load %arg2[%c0_23, %37, %c0_24, %c0_25] : memref<1x18x18x4xf32, #tpu.memory_space<vmem>>, vector<1x8x16x4xf32>
    %39 = vector.shape_cast %38 : vector<1x8x16x4xf32> to vector<8x16x4xf32>
    %40 = vector.shape_cast %39 : vector<8x16x4xf32> to vector<128x4xf32>
    %41 = arith.truncf %40 : vector<128x4xf32> to vector<128x4xbf16>
    %c1_26 = arith.constant 1 : index
    %c0_27 = arith.constant 0 : index
    %c0_28 = arith.constant 0 : index
    %c0_29 = arith.constant 0 : index
    %42 = vector.load %arg3[%c1_26, %c0_27, %c0_28, %c0_29] : memref<3x3x4x128xf32, #tpu.memory_space<vmem>>, vector<1x1x4x128xf32>
    %43 = vector.shape_cast %42 : vector<1x1x4x128xf32> to vector<4x128xf32>
    %44 = arith.truncf %43 : vector<4x128xf32> to vector<4x128xbf16>
    %cst_30 = arith.constant dense<0.000000e+00> : vector<128x128xf32>
    %45 = tpu.matmul %41, %44, %cst_30 {dimension_numbers = #tpu.dot_dimension_numbers<[1], [0], [0], [1], [0, 0, 1, 1], [], []>} : vector<128x4xbf16>, vector<4x128xbf16>, vector<128x128xf32> -> vector<128x128xf32>
    %46 = arith.addf %35, %45 : vector<128x128xf32>
    %c1_i32_31 = arith.constant 1 : i32
    %47 = arith.addi %1, %c1_i32_31 : i32
    %c0_32 = arith.constant 0 : index
    %48 = arith.index_cast %47 : i32 to index
    %c1_33 = arith.constant 1 : index
    %c0_34 = arith.constant 0 : index
    %49 = vector.load %arg2[%c0_32, %48, %c1_33, %c0_34] : memref<1x18x18x4xf32, #tpu.memory_space<vmem>>, vector<1x8x16x4xf32>
    %50 = vector.shape_cast %49 : vector<1x8x16x4xf32> to vector<8x16x4xf32>
    %51 = vector.shape_cast %50 : vector<8x16x4xf32> to vector<128x4xf32>
    %52 = arith.truncf %51 : vector<128x4xf32> to vector<128x4xbf16>
    %c1_35 = arith.constant 1 : index
    %c1_36 = arith.constant 1 : index
    %c0_37 = arith.constant 0 : index
    %c0_38 = arith.constant 0 : index
    %53 = vector.load %arg3[%c1_35, %c1_36, %c0_37, %c0_38] : memref<3x3x4x128xf32, #tpu.memory_space<vmem>>, vector<1x1x4x128xf32>
    %54 = vector.shape_cast %53 : vector<1x1x4x128xf32> to vector<4x128xf32>
    %55 = arith.truncf %54 : vector<4x128xf32> to vector<4x128xbf16>
    %cst_39 = arith.constant dense<0.000000e+00> : vector<128x128xf32>
    %56 = tpu.matmul %52, %55, %cst_39 {dimension_numbers = #tpu.dot_dimension_numbers<[1], [0], [0], [1], [0, 0, 1, 1], [], []>} : vector<128x4xbf16>, vector<4x128xbf16>, vector<128x128xf32> -> vector<128x128xf32>
    %57 = arith.addf %46, %56 : vector<128x128xf32>
    %c1_i32_40 = arith.constant 1 : i32
    %58 = arith.addi %1, %c1_i32_40 : i32
    %c0_41 = arith.constant 0 : index
    %59 = arith.index_cast %58 : i32 to index
    %c2_42 = arith.constant 2 : index
    %c0_43 = arith.constant 0 : index
    %60 = vector.load %arg2[%c0_41, %59, %c2_42, %c0_43] : memref<1x18x18x4xf32, #tpu.memory_space<vmem>>, vector<1x8x16x4xf32>
    %61 = vector.shape_cast %60 : vector<1x8x16x4xf32> to vector<8x16x4xf32>
    %62 = vector.shape_cast %61 : vector<8x16x4xf32> to vector<128x4xf32>
    %63 = arith.truncf %62 : vector<128x4xf32> to vector<128x4xbf16>
    %c1_44 = arith.constant 1 : index
    %c2_45 = arith.constant 2 : index
    %c0_46 = arith.constant 0 : index
    %c0_47 = arith.constant 0 : index
    %64 = vector.load %arg3[%c1_44, %c2_45, %c0_46, %c0_47] : memref<3x3x4x128xf32, #tpu.memory_space<vmem>>, vector<1x1x4x128xf32>
    %65 = vector.shape_cast %64 : vector<1x1x4x128xf32> to vector<4x128xf32>
    %66 = arith.truncf %65 : vector<4x128xf32> to vector<4x128xbf16>
    %cst_48 = arith.constant dense<0.000000e+00> : vector<128x128xf32>
    %67 = tpu.matmul %63, %66, %cst_48 {dimension_numbers = #tpu.dot_dimension_numbers<[1], [0], [0], [1], [0, 0, 1, 1], [], []>} : vector<128x4xbf16>, vector<4x128xbf16>, vector<128x128xf32> -> vector<128x128xf32>
    %68 = arith.addf %57, %67 : vector<128x128xf32>
    %c2_i32 = arith.constant 2 : i32
    %69 = arith.addi %1, %c2_i32 : i32
    %c0_49 = arith.constant 0 : index
    %70 = arith.index_cast %69 : i32 to index
    %c0_50 = arith.constant 0 : index
    %c0_51 = arith.constant 0 : index
    %71 = vector.load %arg2[%c0_49, %70, %c0_50, %c0_51] : memref<1x18x18x4xf32, #tpu.memory_space<vmem>>, vector<1x8x16x4xf32>
    %72 = vector.shape_cast %71 : vector<1x8x16x4xf32> to vector<8x16x4xf32>
    %73 = vector.shape_cast %72 : vector<8x16x4xf32> to vector<128x4xf32>
    %74 = arith.truncf %73 : vector<128x4xf32> to vector<128x4xbf16>
    %c2_52 = arith.constant 2 : index
    %c0_53 = arith.constant 0 : index
    %c0_54 = arith.constant 0 : index
    %c0_55 = arith.constant 0 : index
    %75 = vector.load %arg3[%c2_52, %c0_53, %c0_54, %c0_55] : memref<3x3x4x128xf32, #tpu.memory_space<vmem>>, vector<1x1x4x128xf32>
    %76 = vector.shape_cast %75 : vector<1x1x4x128xf32> to vector<4x128xf32>
    %77 = arith.truncf %76 : vector<4x128xf32> to vector<4x128xbf16>
    %cst_56 = arith.constant dense<0.000000e+00> : vector<128x128xf32>
    %78 = tpu.matmul %74, %77, %cst_56 {dimension_numbers = #tpu.dot_dimension_numbers<[1], [0], [0], [1], [0, 0, 1, 1], [], []>} : vector<128x4xbf16>, vector<4x128xbf16>, vector<128x128xf32> -> vector<128x128xf32>
    %79 = arith.addf %68, %78 : vector<128x128xf32>
    %c2_i32_57 = arith.constant 2 : i32
    %80 = arith.addi %1, %c2_i32_57 : i32
    %c0_58 = arith.constant 0 : index
    %81 = arith.index_cast %80 : i32 to index
    %c1_59 = arith.constant 1 : index
    %c0_60 = arith.constant 0 : index
    %82 = vector.load %arg2[%c0_58, %81, %c1_59, %c0_60] : memref<1x18x18x4xf32, #tpu.memory_space<vmem>>, vector<1x8x16x4xf32>
    %83 = vector.shape_cast %82 : vector<1x8x16x4xf32> to vector<8x16x4xf32>
    %84 = vector.shape_cast %83 : vector<8x16x4xf32> to vector<128x4xf32>
    %85 = arith.truncf %84 : vector<128x4xf32> to vector<128x4xbf16>
    %c2_61 = arith.constant 2 : index
    %c1_62 = arith.constant 1 : index
    %c0_63 = arith.constant 0 : index
    %c0_64 = arith.constant 0 : index
    %86 = vector.load %arg3[%c2_61, %c1_62, %c0_63, %c0_64] : memref<3x3x4x128xf32, #tpu.memory_space<vmem>>, vector<1x1x4x128xf32>
    %87 = vector.shape_cast %86 : vector<1x1x4x128xf32> to vector<4x128xf32>
    %88 = arith.truncf %87 : vector<4x128xf32> to vector<4x128xbf16>
    %cst_65 = arith.constant dense<0.000000e+00> : vector<128x128xf32>
    %89 = tpu.matmul %85, %88, %cst_65 {dimension_numbers = #tpu.dot_dimension_numbers<[1], [0], [0], [1], [0, 0, 1, 1], [], []>} : vector<128x4xbf16>, vector<4x128xbf16>, vector<128x128xf32> -> vector<128x128xf32>
    %90 = arith.addf %79, %89 : vector<128x128xf32>
    %c2_i32_66 = arith.constant 2 : i32
    %91 = arith.addi %1, %c2_i32_66 : i32
    %c0_67 = arith.constant 0 : index
    %92 = arith.index_cast %91 : i32 to index
    %c2_68 = arith.constant 2 : index
    %c0_69 = arith.constant 0 : index
    %93 = vector.load %arg2[%c0_67, %92, %c2_68, %c0_69] : memref<1x18x18x4xf32, #tpu.memory_space<vmem>>, vector<1x8x16x4xf32>
    %94 = vector.shape_cast %93 : vector<1x8x16x4xf32> to vector<8x16x4xf32>
    %95 = vector.shape_cast %94 : vector<8x16x4xf32> to vector<128x4xf32>
    %96 = arith.truncf %95 : vector<128x4xf32> to vector<128x4xbf16>
    %c2_70 = arith.constant 2 : index
    %c2_71 = arith.constant 2 : index
    %c0_72 = arith.constant 0 : index
    %c0_73 = arith.constant 0 : index
    %97 = vector.load %arg3[%c2_70, %c2_71, %c0_72, %c0_73] : memref<3x3x4x128xf32, #tpu.memory_space<vmem>>, vector<1x1x4x128xf32>
    %98 = vector.shape_cast %97 : vector<1x1x4x128xf32> to vector<4x128xf32>
    %99 = arith.truncf %98 : vector<4x128xf32> to vector<4x128xbf16>
    %cst_74 = arith.constant dense<0.000000e+00> : vector<128x128xf32>
    %100 = tpu.matmul %96, %99, %cst_74 {dimension_numbers = #tpu.dot_dimension_numbers<[1], [0], [0], [1], [0, 0, 1, 1], [], []>} : vector<128x4xbf16>, vector<4x128xbf16>, vector<128x128xf32> -> vector<128x128xf32>
    %101 = arith.addf %90, %100 : vector<128x128xf32>
    %c0_75 = arith.constant 0 : index
    %c0_76 = arith.constant 0 : index
    %102 = vector.load %arg4[%c0_75, %c0_76] : memref<1x128xf32, #tpu.memory_space<vmem>>, vector<1x128xf32>
    %103 = vector.broadcast %102 : vector<1x128xf32> to vector<128x128xf32>
    %104 = arith.mulf %101, %103 : vector<128x128xf32>
    %c0_77 = arith.constant 0 : index
    %c0_78 = arith.constant 0 : index
    %105 = vector.load %arg5[%c0_77, %c0_78] : memref<1x128xf32, #tpu.memory_space<vmem>>, vector<1x128xf32>
    %106 = vector.broadcast %105 : vector<1x128xf32> to vector<128x128xf32>
    %107 = arith.addf %104, %106 : vector<128x128xf32>
    %108 = vector.shape_cast %107 : vector<128x128xf32> to vector<8x16x128xf32>
    %c0_79 = arith.constant 0 : index
    %c0_80 = arith.constant 0 : index
    %c0_81 = arith.constant 0 : index
    %c0_82 = arith.constant 0 : index
    %109 = vector.load %arg6[%c0_79, %c0_80, %c0_81, %c0_82] : memref<1x8x16x128xf32, #tpu.memory_space<vmem>>, vector<1x8x16x128xf32>
    %110 = vector.shape_cast %109 : vector<1x8x16x128xf32> to vector<8x16x128xf32>
    %111 = vector.shape_cast %108 : vector<8x16x128xf32> to vector<1x8x16x128xf32>
    tpu.vector_store %arg6[%c0_79, %c0_80, %c0_81, %c0_82], %111 {strides = array<i32>} : memref<1x8x16x128xf32, #tpu.memory_space<vmem>>, vector<1x8x16x128xf32>,
    return
  }
  func.func @transform_0(%arg0: i32, %arg1: i32) -> (i32, i32, i32, i32) {
    %c0_i32 = arith.constant 0 : i32
    %c0_i32_0 = arith.constant 0 : i32
    %c0_i32_1 = arith.constant 0 : i32
    %c0_i32_2 = arith.constant 0 : i32
    return %arg0, %c0_i32, %c0_i32_0, %c0_i32_1 : i32, i32, i32, i32
  }
  func.func @transform_1(%arg0: i32, %arg1: i32) -> (i32, i32, i32, i32) {
    %c0_i32 = arith.constant 0 : i32
    %c0_i32_0 = arith.constant 0 : i32
    %c0_i32_1 = arith.constant 0 : i32
    %c0_i32_2 = arith.constant 0 : i32
    %c0_i32_3 = arith.constant 0 : i32
    return %c0_i32, %c0_i32_0, %c0_i32_1, %c0_i32_2 : i32, i32, i32, i32
  }
  func.func @transform_2(%arg0: i32, %arg1: i32) -> (i32, i32) {
    %c0_i32 = arith.constant 0 : i32
    %c0_i32_0 = arith.constant 0 : i32
    %c0_i32_1 = arith.constant 0 : i32
    return %c0_i32, %c0_i32_0 : i32, i32
  }
  func.func @transform_3(%arg0: i32, %arg1: i32) -> (i32, i32) {
    %c0_i32 = arith.constant 0 : i32
    %c0_i32_0 = arith.constant 0 : i32
    %c0_i32_1 = arith.constant 0 : i32
    return %c0_i32, %c0_i32_0 : i32, i32
  }
  func.func @transform_4(%arg0: i32, %arg1: i32) -> (i32, i32, i32, i32) {
    %c0_i32 = arith.constant 0 : i32
    %c0_i32_0 = arith.constant 0 : i32
    %c0_i32_1 = arith.constant 0 : i32
    return %arg0, %arg1, %c0_i32, %c0_i32_0 : i32, i32, i32, i32
  }
}

</mosaic_0001>

<llo_original>
// kernel: tpu_custom_call.1
$region0: #{tpu_custom_call.1}
  #allocation0 [shape = 'u32[]', space=smem, size = 0x4, offset = 0x4, fixed_abs, tag = 'smem constant byte address 0x4 - core index']
  #allocation1 [shape = 'u32[72,128]{1,0:T(1,128)}', space=vmem, size = 0x9000, scoped, tag = 'internal scratch']
  %s0 = inlined_call_operand.vmem [shape: f32[2,18,18,4], index: 0, kind: input, shape index: {}]
  %s1 = inlined_call_operand.vmem [shape: f32[3,3,4,128], index: 1, kind: input, shape index: {}]
  %s2 = inlined_call_operand.vmem [shape: f32[1,128], index: 2, kind: input, shape index: {}]
  %s3 = inlined_call_operand.vmem [shape: f32[1,128], index: 3, kind: input, shape index: {}]
  %s4 = inlined_call_operand.hbm [shape: f32[2,16,16,128], index: 4, kind: output, shape index: {}]
  %s5 = sld [smem:[#allocation0]]
  $region49: #{tpu_custom_call.1} parent=0
    _
  %s7 = ssub.s32 1, %s5
  %s8 = scalar_select 0, %s7, %s5
  $region1: #{tpu_custom_call.1} parent=0
    #allocation2 [shape = 'u8[131072]{0}', space=vmem, size = 0x20000, scoped, tag = 'output window, operand 0']
    #allocation3 [shape = 's32[2]{0}', space=sflag, size = 0x8, scoped, tag = 'scoped memory for tpu_custom_call.1']
    %9 = vsyncpa [#allocation3], 0
    %s10 = scalar_lea.sflag [#allocation3], 1
    %11 = vsyncpa %s10, 0
    loop: start=0, step=1, limit=6
    $region2: #{tpu_custom_call.1} parent=1 // loop_pre_header
      _
    $region3: #{tpu_custom_call.1} parent=1 // loop_header
      %s13 = sphi 0, %s17
      %p14 = scmp.ge.s32.totalorder %s13, 6
      %s20 = sphi 0, %s32
      %s21 = sphi 0, %s28
      %s22 = sphi 0, %s20
      %s23 = sphi 0, %s21
      %s24 = sphi 0, %s22
      %s25 = sphi 0, %s23
      %s35 = sphi 0, %s37
      %s38 = sphi 0, %s35
      %s39 = sphi 0, %s38
      %s55 = sphi 0, %s39
      %s59 = sphi 0, %s59
      %s61 = sphi 0, %s59
      %s62 = sphi 0, %s61
      %s76 = sphi 0, %s62
      %s80 = sphi 0, %s80
      %s82 = sphi 0, %s80
      %s83 = sphi 0, %s82
      %s97 = sphi 0, %s83
      %s101 = sphi 0, %s101
      %s103 = sphi 0, %s101
      %s104 = sphi 0, %s103
      %s118 = sphi 0, %s104
      %s126 = sphi 0, %s128
      %s129 = sphi 0, %s126
      %s130 = sphi 0, %s129
      %s146 = sphi 0, %s130
    $region4: #{tpu_custom_call.1} parent=1 // loop_header_branch
      %16 = sbr.rel (%p14) target = $region8
    $region5: #{tpu_custom_call.1} parent=1 // loop_body
      %s18 = ssub.s32 %s13, 1
      %s19 = ssub.s32 %s13, 2
      %s26 = sadd.s32 1, %s21
      %p27 = scmp.ge.s32.totalorder %s26, 2
      %s28 = scalar_select %p27, 0, %s26
      %s29 = sadd.s32 1, %s20
      %s30 = scalar_select %p27, %s29, %s20
      %p31 = scmp.ge.s32.totalorder %s30, 2
      %s32 = scalar_select %p31, 0, %s30
      %s33 = ssub.s32 %s20, %s32
      %p34 = scmp.eq.s32.totalorder %s33, 0
      %s36 = sadd.s32 %s35, 1
      %s37 = scalar_select %p34, %s35, %s36
      %p40 = pneg %p34
      %p41 = scmp.eq.s32.totalorder %s13, 3
      %p42 = por %p40, %p41
      %p43 = scmp.ne.s32.totalorder %s35, %s38
      %p44 = scmp.eq.s32.totalorder %s13, 0
      %p45 = por %p43, %p44
      %p46 = scmp.ne.s32.totalorder %s35, %s38
      %p47 = scmp.eq.s32.totalorder %s18, 3
      %p48 = por %p46, %p47
      %p49 = scmp.ne.s32.totalorder %s38, %s39
      %p50 = scmp.eq.s32.totalorder %s18, 0
      %p51 = por %p49, %p50
      %p52 = scmp.ne.s32.totalorder %s38, %s39
      %p53 = scmp.eq.s32.totalorder %s19, 3
      %p54 = por %p52, %p53
      %p56 = scmp.ne.s32.totalorder %s39, %s55
      %p57 = scmp.eq.s32.totalorder %s19, 0
      %p58 = por %p56, %p57
      %s60 = sadd.s32 %s59, 1
      %p63 = scmp.eq.s32.totalorder %s13, 3
      %p64 = scmp.ne.s32.totalorder %s59, %s61
      %p65 = scmp.eq.s32.totalorder %s13, 0
      %p66 = por %p64, %p65
      %p67 = scmp.ne.s32.totalorder %s59, %s61
      %p68 = scmp.eq.s32.totalorder %s18, 3
      %p69 = por %p67, %p68
      %p70 = scmp.ne.s32.totalorder %s61, %s62
      %p71 = scmp.eq.s32.totalorder %s18, 0
      %p72 = por %p70, %p71
      %p73 = scmp.ne.s32.totalorder %s61, %s62
      %p74 = scmp.eq.s32.totalorder %s19, 3
      %p75 = por %p73, %p74
      %p77 = scmp.ne.s32.totalorder %s62, %s76
      %p78 = scmp.eq.s32.totalorder %s19, 0
      %p79 = por %p77, %p78
      %s81 = sadd.s32 %s80, 1
      %p84 = scmp.eq.s32.totalorder %s13, 3
      %p85 = scmp.ne.s32.totalorder %s80, %s82
      %p86 = scmp.eq.s32.totalorder %s13, 0
      %p87 = por %p85, %p86
      %p88 = scmp.ne.s32.totalorder %s80, %s82
      %p89 = scmp.eq.s32.totalorder %s18, 3
      %p90 = por %p88, %p89
      %p91 = scmp.ne.s32.totalorder %s82, %s83
      %p92 = scmp.eq.s32.totalorder %s18, 0
      %p93 = por %p91, %p92
      %p94 = scmp.ne.s32.totalorder %s82, %s83
      %p95 = scmp.eq.s32.totalorder %s19, 3
      %p96 = por %p94, %p95
      %p98 = scmp.ne.s32.totalorder %s83, %s97
      %p99 = scmp.eq.s32.totalorder %s19, 0
      %p100 = por %p98, %p99
      %s102 = sadd.s32 %s101, 1
      %p105 = scmp.eq.s32.totalorder %s13, 3
      %p106 = scmp.ne.s32.totalorder %s101, %s103
      %p107 = scmp.eq.s32.totalorder %s13, 0
      %p108 = por %p106, %p107
      %p109 = scmp.ne.s32.totalorder %s101, %s103
      %p110 = scmp.eq.s32.totalorder %s18, 3
      %p111 = por %p109, %p110
      %p112 = scmp.ne.s32.totalorder %s103, %s104
      %p113 = scmp.eq.s32.totalorder %s18, 0
      %p114 = por %p112, %p113
      %p115 = scmp.ne.s32.totalorder %s103, %s104
      %p116 = scmp.eq.s32.totalorder %s19, 3
      %p117 = por %p115, %p116
      %p119 = scmp.ne.s32.totalorder %s104, %s118
      %p120 = scmp.eq.s32.totalorder %s19, 0
      %p121 = por %p119, %p120
      %s122 = ssub.s32 %s20, %s32
      %s123 = ssub.s32 %s21, %s28
      %s124 = sor.u32 %s122, %s123
      %p125 = scmp.eq.s32.totalorder %s124, 0
      %s127 = sadd.s32 %s126, 1
      %s128 = scalar_select %p125, %s126, %s127
      %p131 = pneg %p125
      %p132 = scmp.eq.s32.totalorder %s13, 3
      %p133 = por %p131, %p132
      %p134 = scmp.ne.s32.totalorder %s126, %s129
      %p135 = scmp.eq.s32.totalorder %s13, 0
      %p136 = por %p134, %p135
      %p137 = scmp.ne.s32.totalorder %s126, %s129
      %p138 = scmp.eq.s32.totalorder %s18, 3
      %p139 = por %p137, %p138
      %p140 = scmp.ne.s32.totalorder %s129, %s130
      %p141 = scmp.eq.s32.totalorder %s18, 0
      %p142 = por %p140, %p141
      %p143 = scmp.ne.s32.totalorder %s129, %s130
      %p144 = scmp.eq.s32.totalorder %s19, 3
      %p145 = por %p143, %p144
      %p147 = scmp.ne.s32.totalorder %s130, %s146
      %p148 = scmp.eq.s32.totalorder %s19, 0
      %p149 = por %p147, %p148
      %p150 = scmp.le.s32.totalorder 1, %s13
      %p151 = scmp.lt.s32.totalorder %s13, 5
      %p152 = pnand %p150, %p151
      %p153 = pneg %p152
      // Predicated region
      $region9: #{tpu_custom_call.1} parent=5 // pred_check
        _
      $region10: #{tpu_custom_call.1} parent=5 // pred_check_branch
        %155 = sbr.rel (%p152) target = $region12
      $region11: #{tpu_custom_call.1} parent=5 // pred_region
        %s156 = ssub.s32 %s13, 1
        // Predicated region
        $region13: #{tpu_custom_call.1} parent=11 // pred_check
          %p157 = pneg %p72
        $region14: #{tpu_custom_call.1} parent=11 // pred_check_branch
          %159 = sbr.rel (%p157) target = $region16
        $region15: #{tpu_custom_call.1} parent=11 // pred_region
          _
        $region16: #{tpu_custom_call.1} parent=11 // pred_fallthru
          _
        // Predicated region
        $region17: #{tpu_custom_call.1} parent=11 // pred_check
          %p160 = pneg %p93
        $region18: #{tpu_custom_call.1} parent=11 // pred_check_branch
          %162 = sbr.rel (%p160) target = $region20
        $region19: #{tpu_custom_call.1} parent=11 // pred_region
          _
        $region20: #{tpu_custom_call.1} parent=11 // pred_fallthru
          _
        // Predicated region
        $region21: #{tpu_custom_call.1} parent=11 // pred_check
          %p163 = pneg %p114
        $region22: #{tpu_custom_call.1} parent=11 // pred_check_branch
          %165 = sbr.rel (%p163) target = $region24
        $region23: #{tpu_custom_call.1} parent=11 // pred_region
          _
        $region24: #{tpu_custom_call.1} parent=11 // pred_fallthru
          _
      $region12: #{tpu_custom_call.1} parent=5 // pred_fallthru
        _
      %p166 = scmp.lt.s32.totalorder %s13, 4
      // Predicated region
      $region25: #{tpu_custom_call.1} parent=5 // pred_check
        %p167 = pneg %p166
      $region26: #{tpu_custom_call.1} parent=5 // pred_check_branch
        %169 = sbr.rel (%p167) target = $region28
      $region27: #{tpu_custom_call.1} parent=5 // pred_region
        // Predicated region
        $region29: #{tpu_custom_call.1} parent=27 // pred_check
          %p170 = pneg %p45
        $region30: #{tpu_custom_call.1} parent=27 // pred_check_branch
          %172 = sbr.rel (%p170) target = $region32
        $region31: #{tpu_custom_call.1} parent=27 // pred_region
          %p173 = scmp.lt.s32.totalorder %s20, 1
          %s174 = scalar_select %p173, %s20, 1
          %s175 = smul.addr %s174, 54
          %s176 = smul.addr %s175, 8
          %s177 = scalar_lea.vmem %s0, %s176
        $region32: #{tpu_custom_call.1} parent=27 // pred_fallthru
          _
      $region28: #{tpu_custom_call.1} parent=5 // pred_fallthru
        _
      %p178 = scmp.le.s32.totalorder 1, %s13
      %p179 = scmp.lt.s32.totalorder %s13, 5
      %p180 = pnand %p178, %p179
      %p181 = pneg %p180
      // Predicated region
      $region33: #{tpu_custom_call.1} parent=5 // pred_check
        _
      $region34: #{tpu_custom_call.1} parent=5 // pred_check_branch
        %183 = sbr.rel (%p180) target = $region36
      $region35: #{tpu_custom_call.1} parent=5 // pred_region
        %s184 = ssub.s32 %s13, 1
        %p185 = scmp.lt.s32.totalorder %s22, 1
        %s186 = scalar_select %p185, %s22, 1
        %s187 = smul.addr %s186, 54
        %s188 = smul.addr %s187, 8
        %s189 = scalar_lea.vmem %s0, %s188
        %p190 = pneg %p51
        %p191 = pneg %p48
        %p192 = pneg %p72
        %p193 = pneg %p69
        %p194 = pneg %p93
        %p195 = pneg %p90
        %p196 = pneg %p114
        %p197 = pneg %p111
        %p198 = pneg %p142
        %p199 = pneg %p139
        %s200 = sand.u32 %s129, 1
        %s201 = scalar_lea.sflag [#allocation3], %s200
        %s202 = sand.u32 %s129, 1
        %s203 = smul.addr %s202, 128
        %s204 = scalar_lea.vmem [#allocation2], %s203
        %p205 = scmp.lt.s32.totalorder %s22, 1
        %s206 = scalar_select %p205, %s22, 1
        %s207 = smul.addr %s206, 54
        %s208 = smul.addr %s207, 8
        %s209 = scalar_lea.vmem %s0, %s208
        %s210 = smul.u32 8, %s23
        %s212 = smul.u32 %s23, 8
        %s213 = smul.u32 %s212, 24
        %s214 = scalar_lea.vmem %s209, %s213
        %v215 = vld [vmem:[%s214] sm:$0xff]
        %v216 = vld [vmem:[%s214 + $0x8] sm:$0xff]
        %v217 = vld [vmem:[%s214 + $0x18] sm:$0xff]
        %v218 = vld [vmem:[%s214 + $0x20] sm:$0xff]
        %v219 = vld [vmem:[%s214 + $0x30] sm:$0xff]
        %v220 = vld [vmem:[%s214 + $0x38] sm:$0xff]
        %v221 = vld [vmem:[%s214 + $0x48] sm:$0xff]
        %v222 = vld [vmem:[%s214 + $0x50] sm:$0xff]
        %v223 = vld [vmem:[%s214 + $0x60] sm:$0xff]
        %v224 = vld [vmem:[%s214 + $0x68] sm:$0xff]
        %v225 = vld [vmem:[%s214 + $0x78] sm:$0xff]
        %v226 = vld [vmem:[%s214 + $0x80] sm:$0xff]
        %v227 = vld [vmem:[%s214 + $0x90] sm:$0xff]
        %v228 = vld [vmem:[%s214 + $0x98] sm:$0xff]
        %v229 = vld [vmem:[%s214 + $0xa8] sm:$0xff]
        %v230 = vld [vmem:[%s214 + $0xb0] sm:$0xff]
        %v231 = vpack.c.bf16 %v216, %v215
        %v232 = vpack.c.bf16 %v218, %v217
        %v233 = vpack.c.bf16 %v220, %v219
        %v234 = vpack.c.bf16 %v222, %v221
        %v235 = vpack.c.bf16 %v224, %v223
        %v236 = vpack.c.bf16 %v226, %v225
        %v237 = vpack.c.bf16 %v228, %v227
        %v238 = vpack.c.bf16 %v230, %v229
        %v239 = vld [vmem:[%s1] sm:$0xf]
        %v240 = vpack.c.bf16 %v239, %v239
        %v241 = vld [vmem:[%s214 + $0x1] sm:$0xff]
        %v242 = vld [vmem:[%s214 + $0x9] sm:$0xff]
        %v243 = vld [vmem:[%s214 + $0x19] sm:$0xff]
        %v244 = vld [vmem:[%s214 + $0x21] sm:$0xff]
        %v245 = vld [vmem:[%s214 + $0x31] sm:$0xff]
        %v246 = vld [vmem:[%s214 + $0x39] sm:$0xff]
        %v247 = vld [vmem:[%s214 + $0x49] sm:$0xff]
        %v248 = vld [vmem:[%s214 + $0x51] sm:$0xff]
        %v249 = vld [vmem:[%s214 + $0x61] sm:$0xff]
        %v250 = vld [vmem:[%s214 + $0x69] sm:$0xff]
        %v251 = vld [vmem:[%s214 + $0x79] sm:$0xff]
        %v252 = vld [vmem:[%s214 + $0x81] sm:$0xff]
        %v253 = vld [vmem:[%s214 + $0x91] sm:$0xff]
        %v254 = vld [vmem:[%s214 + $0x99] sm:$0xff]
        %v255 = vld [vmem:[%s214 + $0xa9] sm:$0xff]
        %v256 = vld [vmem:[%s214 + $0xb1] sm:$0xff]
        %v257 = vpack.c.bf16 %v242, %v241
        %v258 = vpack.c.bf16 %v244, %v243
        %v259 = vpack.c.bf16 %v246, %v245
        %v260 = vpack.c.bf16 %v248, %v247
        %v261 = vpack.c.bf16 %v250, %v249
        %v262 = vpack.c.bf16 %v252, %v251
        %v263 = vpack.c.bf16 %v254, %v253
        %v264 = vpack.c.bf16 %v256, %v255
        %s265 = scalar_lea.vmem %s1, 4
        %v266 = vld [vmem:[%s265] sm:$0xf]
        %v267 = vpack.c.bf16 %v266, %v266
        %vm268 = vcmask 31744
        %v270 = vsel %vm268, %v257, 0
        %v273 = vsel %vm268, %v258, 0
        %v276 = vsel %vm268, %v259, 0
        %v279 = vsel %vm268, %v260, 0
        %v282 = vsel %vm268, %v261, 0
        %v285 = vsel %vm268, %v262, 0
        %v288 = vsel %vm268, %v263, 0
        %v291 = vsel %vm268, %v264, 0
        %vm293 = vcmask 1041408
        %v295 = vsel %vm293, %v267, 0
        %297 = vmatpush.bf16.msra.mxu0 0
        %298 = vmatpush.bf16.msra.mxu0 0
        %299 = vmatpush.bf16.msra.mxu0 0
        %300 = vmatpush.bf16.msra.mxu0 0
        %301 = vmatpush.bf16.msra.mxu0 0
        %302 = vmatpush.bf16.msra.mxu0 0
        %303 = vmatpush.bf16.msra.mxu0 0
        %304 = vmatpush.bf16.msra.mxu0 %v295
        %305 = vmatmul.bf16.gmra.mxu0 %v270
        %v306 = vpop.f32.mrf.mxu0
        %v307 = vadd.f32 0.0, %v306
        %v308 = vpop.f32.mrf.mxu0
        %v309 = vadd.f32 0.0, %v308
        %310 = vmatmul.bf16.gmra.mxu0 %v273
        %v311 = vpop.f32.mrf.mxu0
        %v312 = vadd.f32 0.0, %v311
        %v313 = vpop.f32.mrf.mxu0
        %v314 = vadd.f32 0.0, %v313
        %315 = vmatmul.bf16.gmra.mxu0 %v276
        %v316 = vpop.f32.mrf.mxu0
        %v317 = vadd.f32 0.0, %v316
        %v318 = vpop.f32.mrf.mxu0
        %v319 = vadd.f32 0.0, %v318
        %320 = vmatmul.bf16.gmra.mxu0 %v279
        %v321 = vpop.f32.mrf.mxu0
        %v322 = vadd.f32 0.0, %v321
        %v323 = vpop.f32.mrf.mxu0
        %v324 = vadd.f32 0.0, %v323
        %325 = vmatmul.bf16.gmra.mxu0 %v282
        %v326 = vpop.f32.mrf.mxu0
        %v327 = vadd.f32 0.0, %v326
        %v328 = vpop.f32.mrf.mxu0
        %v329 = vadd.f32 0.0, %v328
        %330 = vmatmul.bf16.gmra.mxu0 %v285
        %v331 = vpop.f32.mrf.mxu0
        %v332 = vadd.f32 0.0, %v331
        %v333 = vpop.f32.mrf.mxu0
        %v334 = vadd.f32 0.0, %v333
        %335 = vmatmul.bf16.gmra.mxu0 %v288
        %v336 = vpop.f32.mrf.mxu0
        %v337 = vadd.f32 0.0, %v336
        %v338 = vpop.f32.mrf.mxu0
        %v339 = vadd.f32 0.0, %v338
        %340 = vmatmul.bf16.gmra.mxu0 %v291
        %v341 = vpop.f32.mrf.mxu0
        %v342 = vadd.f32 0.0, %v341
        %v343 = vpop.f32.mrf.mxu0
        %v344 = vadd.f32 0.0, %v343
        %345 = vdwg.mxu0
        %v347 = vsel %vm268, %v231, 0
        %v350 = vsel %vm268, %v232, 0
        %v353 = vsel %vm268, %v233, 0
        %v356 = vsel %vm268, %v234, 0
        %v359 = vsel %vm268, %v235, 0
        %v362 = vsel %vm268, %v236, 0
        %v365 = vsel %vm268, %v237, 0
        %v368 = vsel %vm268, %v238, 0
        %v371 = vsel %vm293, %v240, 0
        %373 = vmatpush.bf16.msra.mxu0 0
        %374 = vmatpush.bf16.msra.mxu0 0
        %375 = vmatpush.bf16.msra.mxu0 0
        %376 = vmatpush.bf16.msra.mxu0 0
        %377 = vmatpush.bf16.msra.mxu0 0
        %378 = vmatpush.bf16.msra.mxu0 0
        %379 = vmatpush.bf16.msra.mxu0 0
        %380 = vmatpush.bf16.msra.mxu0 %v371
        %381 = vmatmul.bf16.gmra.mxu0 %v347
        %v382 = vpop.f32.mrf.mxu0
        %v383 = vadd.f32 %v307, %v382
        %v384 = vpop.f32.mrf.mxu0
        %v385 = vadd.f32 %v309, %v384
        %386 = vmatmul.bf16.gmra.mxu0 %v350
        %v387 = vpop.f32.mrf.mxu0
        %v388 = vadd.f32 %v312, %v387
        %v389 = vpop.f32.mrf.mxu0
        %v390 = vadd.f32 %v314, %v389
        %391 = vmatmul.bf16.gmra.mxu0 %v353
        %v392 = vpop.f32.mrf.mxu0
        %v393 = vadd.f32 %v317, %v392
        %v394 = vpop.f32.mrf.mxu0
        %v395 = vadd.f32 %v319, %v394
        %396 = vmatmul.bf16.gmra.mxu0 %v356
        %v397 = vpop.f32.mrf.mxu0
        %v398 = vadd.f32 %v322, %v397
        %v399 = vpop.f32.mrf.mxu0
        %v400 = vadd.f32 %v324, %v399
        %401 = vmatmul.bf16.gmra.mxu0 %v359
        %v402 = vpop.f32.mrf.mxu0
        %v403 = vadd.f32 %v327, %v402
        %v404 = vpop.f32.mrf.mxu0
        %v405 = vadd.f32 %v329, %v404
        %406 = vmatmul.bf16.gmra.mxu0 %v362
        %v407 = vpop.f32.mrf.mxu0
        %v408 = vadd.f32 %v332, %v407
        %v409 = vpop.f32.mrf.mxu0
        %v410 = vadd.f32 %v334, %v409
        %411 = vmatmul.bf16.gmra.mxu0 %v365
        %v412 = vpop.f32.mrf.mxu0
        %v413 = vadd.f32 %v337, %v412
        %v414 = vpop.f32.mrf.mxu0
        %v415 = vadd.f32 %v339, %v414
        %416 = vmatmul.bf16.gmra.mxu0 %v368
        %v417 = vpop.f32.mrf.mxu0
        %v418 = vadd.f32 %v342, %v417
        %v419 = vpop.f32.mrf.mxu0
        %v420 = vadd.f32 %v344, %v419
        %421 = vdwg.mxu0
        %v422 = vld [vmem:[%s214 + $0x2] sm:$0xff]
        %v423 = vld [vmem:[%s214 + $0xa] sm:$0xff]
        %v424 = vld [vmem:[%s214 + $0x1a] sm:$0xff]
        %v425 = vld [vmem:[%s214 + $0x22] sm:$0xff]
        %v426 = vld [vmem:[%s214 + $0x32] sm:$0xff]
        %v427 = vld [vmem:[%s214 + $0x3a] sm:$0xff]
        %v428 = vld [vmem:[%s214 + $0x4a] sm:$0xff]
        %v429 = vld [vmem:[%s214 + $0x52] sm:$0xff]
        %v430 = vld [vmem:[%s214 + $0x62] sm:$0xff]
        %v431 = vld [vmem:[%s214 + $0x6a] sm:$0xff]
        %v432 = vld [vmem:[%s214 + $0x7a] sm:$0xff]
        %v433 = vld [vmem:[%s214 + $0x82] sm:$0xff]
        %v434 = vld [vmem:[%s214 + $0x92] sm:$0xff]
        %v435 = vld [vmem:[%s214 + $0x9a] sm:$0xff]
        %v436 = vld [vmem:[%s214 + $0xaa] sm:$0xff]
        %v437 = vld [vmem:[%s214 + $0xb2] sm:$0xff]
        %v438 = vpack.c.bf16 %v423, %v422
        %v439 = vpack.c.bf16 %v425, %v424
        %v440 = vpack.c.bf16 %v427, %v426
        %v441 = vpack.c.bf16 %v429, %v428
        %v442 = vpack.c.bf16 %v431, %v430
        %v443 = vpack.c.bf16 %v433, %v432
        %v444 = vpack.c.bf16 %v435, %v434
        %v445 = vpack.c.bf16 %v437, %v436
        %s446 = scalar_lea.vmem %s1, 8
        %v447 = vld [vmem:[%s446] sm:$0xf]
        %v448 = vpack.c.bf16 %v447, %v447
        %v450 = vsel %vm268, %v438, 0
        %v453 = vsel %vm268, %v439, 0
        %v456 = vsel %vm268, %v440, 0
        %v459 = vsel %vm268, %v441, 0
        %v462 = vsel %vm268, %v442, 0
        %v465 = vsel %vm268, %v443, 0
        %v468 = vsel %vm268, %v444, 0
        %v471 = vsel %vm268, %v445, 0
        %v474 = vsel %vm293, %v448, 0
        %476 = vmatpush.bf16.msra.mxu0 0
        %477 = vmatpush.bf16.msra.mxu0 0
        %478 = vmatpush.bf16.msra.mxu0 0
        %479 = vmatpush.bf16.msra.mxu0 0
        %480 = vmatpush.bf16.msra.mxu0 0
        %481 = vmatpush.bf16.msra.mxu0 0
        %482 = vmatpush.bf16.msra.mxu0 0
        %483 = vmatpush.bf16.msra.mxu0 %v474
        %484 = vmatmul.bf16.gmra.mxu0 %v450
        %v485 = vpop.f32.mrf.mxu0
        %v486 = vadd.f32 0.0, %v485
        %v487 = vpop.f32.mrf.mxu0
        %v488 = vadd.f32 0.0, %v487
        %489 = vmatmul.bf16.gmra.mxu0 %v453
        %v490 = vpop.f32.mrf.mxu0
        %v491 = vadd.f32 0.0, %v490
        %v492 = vpop.f32.mrf.mxu0
        %v493 = vadd.f32 0.0, %v492
        %494 = vmatmul.bf16.gmra.mxu0 %v456
        %v495 = vpop.f32.mrf.mxu0
        %v496 = vadd.f32 0.0, %v495
        %v497 = vpop.f32.mrf.mxu0
        %v498 = vadd.f32 0.0, %v497
        %499 = vmatmul.bf16.gmra.mxu0 %v459
        %v500 = vpop.f32.mrf.mxu0
        %v501 = vadd.f32 0.0, %v500
        %v502 = vpop.f32.mrf.mxu0
        %v503 = vadd.f32 0.0, %v502
        %504 = vmatmul.bf16.gmra.mxu0 %v462
        %v505 = vpop.f32.mrf.mxu0
        %v506 = vadd.f32 0.0, %v505
        %v507 = vpop.f32.mrf.mxu0
        %v508 = vadd.f32 0.0, %v507
        %509 = vmatmul.bf16.gmra.mxu0 %v465
        %v510 = vpop.f32.mrf.mxu0
        %v511 = vadd.f32 0.0, %v510
        %v512 = vpop.f32.mrf.mxu0
        %v513 = vadd.f32 0.0, %v512
        %514 = vmatmul.bf16.gmra.mxu0 %v468
        %v515 = vpop.f32.mrf.mxu0
        %v516 = vadd.f32 0.0, %v515
        %v517 = vpop.f32.mrf.mxu0
        %v518 = vadd.f32 0.0, %v517
        %519 = vmatmul.bf16.gmra.mxu0 %v471
        %v520 = vpop.f32.mrf.mxu0
        %v521 = vadd.f32 0.0, %v520
        %v522 = vpop.f32.mrf.mxu0
        %v523 = vadd.f32 0.0, %v522
        %524 = vdwg.mxu0
        %v525 = vadd.f32 %v383, %v486
        %v526 = vadd.f32 %v385, %v488
        %v527 = vadd.f32 %v388, %v491
        %v528 = vadd.f32 %v390, %v493
        %v529 = vadd.f32 %v393, %v496
        %v530 = vadd.f32 %v395, %v498
        %v531 = vadd.f32 %v398, %v501
        %v532 = vadd.f32 %v400, %v503
        %v533 = vadd.f32 %v403, %v506
        %v534 = vadd.f32 %v405, %v508
        %v535 = vadd.f32 %v408, %v511
        %v536 = vadd.f32 %v410, %v513
        %v537 = vadd.f32 %v413, %v516
        %v538 = vadd.f32 %v415, %v518
        %v539 = vadd.f32 %v418, %v521
        %v540 = vadd.f32 %v420, %v523
        %s541 = sadd.s32 %s212, 1
        %s542 = smul.u32 %s541, 24
        %s543 = scalar_lea.vmem %s209, %s542
        %v544 = vld [vmem:[%s543] sm:$0xff]
        %v545 = vld [vmem:[%s543 + $0x8] sm:$0xff]
        %v546 = vld [vmem:[%s543 + $0x18] sm:$0xff]
        %v547 = vld [vmem:[%s543 + $0x20] sm:$0xff]
        %v548 = vld [vmem:[%s543 + $0x30] sm:$0xff]
        %v549 = vld [vmem:[%s543 + $0x38] sm:$0xff]
        %v550 = vld [vmem:[%s543 + $0x48] sm:$0xff]
        %v551 = vld [vmem:[%s543 + $0x50] sm:$0xff]
        %v552 = vld [vmem:[%s543 + $0x60] sm:$0xff]
        %v553 = vld [vmem:[%s543 + $0x68] sm:$0xff]
        %v554 = vld [vmem:[%s543 + $0x78] sm:$0xff]
        %v555 = vld [vmem:[%s543 + $0x80] sm:$0xff]
        %v556 = vld [vmem:[%s543 + $0x90] sm:$0xff]
        %v557 = vld [vmem:[%s543 + $0x98] sm:$0xff]
        %v558 = vld [vmem:[%s543 + $0xa8] sm:$0xff]
        %v559 = vld [vmem:[%s543 + $0xb0] sm:$0xff]
        %v560 = vpack.c.bf16 %v545, %v544
        %v561 = vpack.c.bf16 %v547, %v546
        %v562 = vpack.c.bf16 %v549, %v548
        %v563 = vpack.c.bf16 %v551, %v550
        %v564 = vpack.c.bf16 %v553, %v552
        %v565 = vpack.c.bf16 %v555, %v554
        %v566 = vpack.c.bf16 %v557, %v556
        %v567 = vpack.c.bf16 %v559, %v558
        %s568 = scalar_lea.vmem %s1, 12
        %v569 = vld [vmem:[%s568] sm:$0xf]
        %v570 = vpack.c.bf16 %v569, %v569
        %v572 = vsel %vm268, %v560, 0
        %v575 = vsel %vm268, %v561, 0
        %v578 = vsel %vm268, %v562, 0
        %v581 = vsel %vm268, %v563, 0
        %v584 = vsel %vm268, %v564, 0
        %v587 = vsel %vm268, %v565, 0
        %v590 = vsel %vm268, %v566, 0
        %v593 = vsel %vm268, %v567, 0
        %v596 = vsel %vm293, %v570, 0
        %598 = vmatpush.bf16.msra.mxu0 0
        %599 = vmatpush.bf16.msra.mxu0 0
        %600 = vmatpush.bf16.msra.mxu0 0
        %601 = vmatpush.bf16.msra.mxu0 0
        %602 = vmatpush.bf16.msra.mxu0 0
        %603 = vmatpush.bf16.msra.mxu0 0
        %604 = vmatpush.bf16.msra.mxu0 0
        %605 = vmatpush.bf16.msra.mxu0 %v596
        %606 = vmatmul.bf16.gmra.mxu0 %v572
        %v607 = vpop.f32.mrf.mxu0
        %v608 = vadd.f32 0.0, %v607
        %v609 = vpop.f32.mrf.mxu0
        %v610 = vadd.f32 0.0, %v609
        %611 = vmatmul.bf16.gmra.mxu0 %v575
        %v612 = vpop.f32.mrf.mxu0
        %v613 = vadd.f32 0.0, %v612
        %v614 = vpop.f32.mrf.mxu0
        %v615 = vadd.f32 0.0, %v614
        %616 = vmatmul.bf16.gmra.mxu0 %v578
        %v617 = vpop.f32.mrf.mxu0
        %v618 = vadd.f32 0.0, %v617
        %v619 = vpop.f32.mrf.mxu0
        %v620 = vadd.f32 0.0, %v619
        %621 = vmatmul.bf16.gmra.mxu0 %v581
        %v622 = vpop.f32.mrf.mxu0
        %v623 = vadd.f32 0.0, %v622
        %v624 = vpop.f32.mrf.mxu0
        %v625 = vadd.f32 0.0, %v624
        %626 = vmatmul.bf16.gmra.mxu0 %v584
        %v627 = vpop.f32.mrf.mxu0
        %v628 = vadd.f32 0.0, %v627
        %v629 = vpop.f32.mrf.mxu0
        %v630 = vadd.f32 0.0, %v629
        %631 = vmatmul.bf16.gmra.mxu0 %v587
        %v632 = vpop.f32.mrf.mxu0
        %v633 = vadd.f32 0.0, %v632
        %v634 = vpop.f32.mrf.mxu0
        %v635 = vadd.f32 0.0, %v634
        %636 = vmatmul.bf16.gmra.mxu0 %v590
        %v637 = vpop.f32.mrf.mxu0
        %v638 = vadd.f32 0.0, %v637
        %v639 = vpop.f32.mrf.mxu0
        %v640 = vadd.f32 0.0, %v639
        %641 = vmatmul.bf16.gmra.mxu0 %v593
        %v642 = vpop.f32.mrf.mxu0
        %v643 = vadd.f32 0.0, %v642
        %v644 = vpop.f32.mrf.mxu0
        %v645 = vadd.f32 0.0, %v644
        %646 = vdwg.mxu0
        %v647 = vadd.f32 %v525, %v608
        %v648 = vadd.f32 %v526, %v610
        %v649 = vadd.f32 %v527, %v613
        %v650 = vadd.f32 %v528, %v615
        %v651 = vadd.f32 %v529, %v618
        %v652 = vadd.f32 %v530, %v620
        %v653 = vadd.f32 %v531, %v623
        %v654 = vadd.f32 %v532, %v625
        %v655 = vadd.f32 %v533, %v628
        %v656 = vadd.f32 %v534, %v630
        %v657 = vadd.f32 %v535, %v633
        %v658 = vadd.f32 %v536, %v635
        %v659 = vadd.f32 %v537, %v638
        %v660 = vadd.f32 %v538, %v640
        %v661 = vadd.f32 %v539, %v643
        %v662 = vadd.f32 %v540, %v645
        %v663 = vld [vmem:[%s543 + $0x1] sm:$0xff]
        %v664 = vld [vmem:[%s543 + $0x9] sm:$0xff]
        %v665 = vld [vmem:[%s543 + $0x19] sm:$0xff]
        %v666 = vld [vmem:[%s543 + $0x21] sm:$0xff]
        %v667 = vld [vmem:[%s543 + $0x31] sm:$0xff]
        %v668 = vld [vmem:[%s543 + $0x39] sm:$0xff]
        %v669 = vld [vmem:[%s543 + $0x49] sm:$0xff]
        %v670 = vld [vmem:[%s543 + $0x51] sm:$0xff]
        %v671 = vld [vmem:[%s543 + $0x61] sm:$0xff]
        %v672 = vld [vmem:[%s543 + $0x69] sm:$0xff]
        %v673 = vld [vmem:[%s543 + $0x79] sm:$0xff]
        %v674 = vld [vmem:[%s543 + $0x81] sm:$0xff]
        %v675 = vld [vmem:[%s543 + $0x91] sm:$0xff]
        %v676 = vld [vmem:[%s543 + $0x99] sm:$0xff]
        %v677 = vld [vmem:[%s543 + $0xa9] sm:$0xff]
        %v678 = vld [vmem:[%s543 + $0xb1] sm:$0xff]
        %v679 = vpack.c.bf16 %v664, %v663
        %v680 = vpack.c.bf16 %v666, %v665
        %v681 = vpack.c.bf16 %v668, %v667
        %v682 = vpack.c.bf16 %v670, %v669
        %v683 = vpack.c.bf16 %v672, %v671
        %v684 = vpack.c.bf16 %v674, %v673
        %v685 = vpack.c.bf16 %v676, %v675
        %v686 = vpack.c.bf16 %v678, %v677
        %s687 = scalar_lea.vmem %s1, 16
        %v688 = vld [vmem:[%s687] sm:$0xf]
        %v689 = vpack.c.bf16 %v688, %v688
        %v691 = vsel %vm268, %v679, 0
        %v694 = vsel %vm268, %v680, 0
        %v697 = vsel %vm268, %v681, 0
        %v700 = vsel %vm268, %v682, 0
        %v703 = vsel %vm268, %v683, 0
        %v706 = vsel %vm268, %v684, 0
        %v709 = vsel %vm268, %v685, 0
        %v712 = vsel %vm268, %v686, 0
        %v715 = vsel %vm293, %v689, 0
        %717 = vmatpush.bf16.msra.mxu0 0
        %718 = vmatpush.bf16.msra.mxu0 0
        %719 = vmatpush.bf16.msra.mxu0 0
        %720 = vmatpush.bf16.msra.mxu0 0
        %721 = vmatpush.bf16.msra.mxu0 0
        %722 = vmatpush.bf16.msra.mxu0 0
        %723 = vmatpush.bf16.msra.mxu0 0
        %724 = vmatpush.bf16.msra.mxu0 %v715
        %725 = vmatmul.bf16.gmra.mxu0 %v691
        %v726 = vpop.f32.mrf.mxu0
        %v727 = vadd.f32 0.0, %v726
        %v728 = vpop.f32.mrf.mxu0
        %v729 = vadd.f32 0.0, %v728
        %730 = vmatmul.bf16.gmra.mxu0 %v694
        %v731 = vpop.f32.mrf.mxu0
        %v732 = vadd.f32 0.0, %v731
        %v733 = vpop.f32.mrf.mxu0
        %v734 = vadd.f32 0.0, %v733
        %735 = vmatmul.bf16.gmra.mxu0 %v697
        %v736 = vpop.f32.mrf.mxu0
        %v737 = vadd.f32 0.0, %v736
        %v738 = vpop.f32.mrf.mxu0
        %v739 = vadd.f32 0.0, %v738
        %740 = vmatmul.bf16.gmra.mxu0 %v700
        %v741 = vpop.f32.mrf.mxu0
        %v742 = vadd.f32 0.0, %v741
        %v743 = vpop.f32.mrf.mxu0
        %v744 = vadd.f32 0.0, %v743
        %745 = vmatmul.bf16.gmra.mxu0 %v703
        %v746 = vpop.f32.mrf.mxu0
        %v747 = vadd.f32 0.0, %v746
        %v748 = vpop.f32.mrf.mxu0
        %v749 = vadd.f32 0.0, %v748
        %750 = vmatmul.bf16.gmra.mxu0 %v706
        %v751 = vpop.f32.mrf.mxu0
        %v752 = vadd.f32 0.0, %v751
        %v753 = vpop.f32.mrf.mxu0
        %v754 = vadd.f32 0.0, %v753
        %755 = vmatmul.bf16.gmra.mxu0 %v709
        %v756 = vpop.f32.mrf.mxu0
        %v757 = vadd.f32 0.0, %v756
        %v758 = vpop.f32.mrf.mxu0
        %v759 = vadd.f32 0.0, %v758
        %760 = vmatmul.bf16.gmra.mxu0 %v712
        %v761 = vpop.f32.mrf.mxu0
        %v762 = vadd.f32 0.0, %v761
        %v763 = vpop.f32.mrf.mxu0
        %v764 = vadd.f32 0.0, %v763
        %765 = vdwg.mxu0
        %v766 = vadd.f32 %v647, %v727
        %v767 = vadd.f32 %v648, %v729
        %v768 = vadd.f32 %v649, %v732
        %v769 = vadd.f32 %v650, %v734
        %v770 = vadd.f32 %v651, %v737
        %v771 = vadd.f32 %v652, %v739
        %v772 = vadd.f32 %v653, %v742
        %v773 = vadd.f32 %v654, %v744
        %v774 = vadd.f32 %v655, %v747
        %v775 = vadd.f32 %v656, %v749
        %v776 = vadd.f32 %v657, %v752
        %v777 = vadd.f32 %v658, %v754
        %v778 = vadd.f32 %v659, %v757
        %v779 = vadd.f32 %v660, %v759
        %v780 = vadd.f32 %v661, %v762
        %v781 = vadd.f32 %v662, %v764
        %v782 = vld [vmem:[%s543 + $0x2] sm:$0xff]
        %v783 = vld [vmem:[%s543 + $0xa] sm:$0xff]
        %v784 = vld [vmem:[%s543 + $0x1a] sm:$0xff]
        %v785 = vld [vmem:[%s543 + $0x22] sm:$0xff]
        %v786 = vld [vmem:[%s543 + $0x32] sm:$0xff]
        %v787 = vld [vmem:[%s543 + $0x3a] sm:$0xff]
        %v788 = vld [vmem:[%s543 + $0x4a] sm:$0xff]
        %v789 = vld [vmem:[%s543 + $0x52] sm:$0xff]
        %v790 = vld [vmem:[%s543 + $0x62] sm:$0xff]
        %v791 = vld [vmem:[%s543 + $0x6a] sm:$0xff]
        %v792 = vld [vmem:[%s543 + $0x7a] sm:$0xff]
        %v793 = vld [vmem:[%s543 + $0x82] sm:$0xff]
        %v794 = vld [vmem:[%s543 + $0x92] sm:$0xff]
        %v795 = vld [vmem:[%s543 + $0x9a] sm:$0xff]
        %v796 = vld [vmem:[%s543 + $0xaa] sm:$0xff]
        %v797 = vld [vmem:[%s543 + $0xb2] sm:$0xff]
        %v798 = vpack.c.bf16 %v783, %v782
        %v799 = vpack.c.bf16 %v785, %v784
        %v800 = vpack.c.bf16 %v787, %v786
        %v801 = vpack.c.bf16 %v789, %v788
        %v802 = vpack.c.bf16 %v791, %v790
        %v803 = vpack.c.bf16 %v793, %v792
        %v804 = vpack.c.bf16 %v795, %v794
        %v805 = vpack.c.bf16 %v797, %v796
        %s806 = scalar_lea.vmem %s1, 20
        %v807 = vld [vmem:[%s806] sm:$0xf]
        %v808 = vpack.c.bf16 %v807, %v807
        %v810 = vsel %vm268, %v798, 0
        %v813 = vsel %vm268, %v799, 0
        %v816 = vsel %vm268, %v800, 0
        %v819 = vsel %vm268, %v801, 0
        %v822 = vsel %vm268, %v802, 0
        %v825 = vsel %vm268, %v803, 0
        %v828 = vsel %vm268, %v804, 0
        %v831 = vsel %vm268, %v805, 0
        %v834 = vsel %vm293, %v808, 0
        %836 = vmatpush.bf16.msra.mxu0 0
        %837 = vmatpush.bf16.msra.mxu0 0
        %838 = vmatpush.bf16.msra.mxu0 0
        %839 = vmatpush.bf16.msra.mxu0 0
        %840 = vmatpush.bf16.msra.mxu0 0
        %841 = vmatpush.bf16.msra.mxu0 0
        %842 = vmatpush.bf16.msra.mxu0 0
        %843 = vmatpush.bf16.msra.mxu0 %v834
        %844 = vmatmul.bf16.gmra.mxu0 %v810
        %v845 = vpop.f32.mrf.mxu0
        %v846 = vadd.f32 0.0, %v845
        %v847 = vpop.f32.mrf.mxu0
        %v848 = vadd.f32 0.0, %v847
        %849 = vmatmul.bf16.gmra.mxu0 %v813
        %v850 = vpop.f32.mrf.mxu0
        %v851 = vadd.f32 0.0, %v850
        %v852 = vpop.f32.mrf.mxu0
        %v853 = vadd.f32 0.0, %v852
        %854 = vmatmul.bf16.gmra.mxu0 %v816
        %v855 = vpop.f32.mrf.mxu0
        %v856 = vadd.f32 0.0, %v855
        %v857 = vpop.f32.mrf.mxu0
        %v858 = vadd.f32 0.0, %v857
        %859 = vmatmul.bf16.gmra.mxu0 %v819
        %v860 = vpop.f32.mrf.mxu0
        %v861 = vadd.f32 0.0, %v860
        %v862 = vpop.f32.mrf.mxu0
        %v863 = vadd.f32 0.0, %v862
        %864 = vmatmul.bf16.gmra.mxu0 %v822
        %v865 = vpop.f32.mrf.mxu0
        %v866 = vadd.f32 0.0, %v865
        %v867 = vpop.f32.mrf.mxu0
        %v868 = vadd.f32 0.0, %v867
        %869 = vmatmul.bf16.gmra.mxu0 %v825
        %v870 = vpop.f32.mrf.mxu0
        %v871 = vadd.f32 0.0, %v870
        %v872 = vpop.f32.mrf.mxu0
        %v873 = vadd.f32 0.0, %v872
        %874 = vmatmul.bf16.gmra.mxu0 %v828
        %v875 = vpop.f32.mrf.mxu0
        %v876 = vadd.f32 0.0, %v875
        %v877 = vpop.f32.mrf.mxu0
        %v878 = vadd.f32 0.0, %v877
        %879 = vmatmul.bf16.gmra.mxu0 %v831
        %v880 = vpop.f32.mrf.mxu0
        %v881 = vadd.f32 0.0, %v880
        %v882 = vpop.f32.mrf.mxu0
        %v883 = vadd.f32 0.0, %v882
        %884 = vdwg.mxu0
        %v885 = vadd.f32 %v766, %v846
        %v886 = vadd.f32 %v767, %v848
        %v887 = vadd.f32 %v768, %v851
        %v888 = vadd.f32 %v769, %v853
        %v889 = vadd.f32 %v770, %v856
        %v890 = vadd.f32 %v771, %v858
        %v891 = vadd.f32 %v772, %v861
        %v892 = vadd.f32 %v773, %v863
        %v893 = vadd.f32 %v774, %v866
        %v894 = vadd.f32 %v775, %v868
        %v895 = vadd.f32 %v776, %v871
        %v896 = vadd.f32 %v777, %v873
        %v897 = vadd.f32 %v778, %v876
        %v898 = vadd.f32 %v779, %v878
        %v899 = vadd.f32 %v780, %v881
        %v900 = vadd.f32 %v781, %v883
        %s901 = sadd.s32 %s212, 2
        %s902 = smul.u32 %s901, 24
        %s903 = scalar_lea.vmem %s209, %s902
        %v904 = vld [vmem:[%s903] sm:$0xff]
        %v905 = vld [vmem:[%s903 + $0x8] sm:$0xff]
        %v906 = vld [vmem:[%s903 + $0x18] sm:$0xff]
        %v907 = vld [vmem:[%s903 + $0x20] sm:$0xff]
        %v908 = vld [vmem:[%s903 + $0x30] sm:$0xff]
        %v909 = vld [vmem:[%s903 + $0x38] sm:$0xff]
        %v910 = vld [vmem:[%s903 + $0x48] sm:$0xff]
        %v911 = vld [vmem:[%s903 + $0x50] sm:$0xff]
        %v912 = vld [vmem:[%s903 + $0x60] sm:$0xff]
        %v913 = vld [vmem:[%s903 + $0x68] sm:$0xff]
        %v914 = vld [vmem:[%s903 + $0x78] sm:$0xff]
        %v915 = vld [vmem:[%s903 + $0x80] sm:$0xff]
        %v916 = vld [vmem:[%s903 + $0x90] sm:$0xff]
        %v917 = vld [vmem:[%s903 + $0x98] sm:$0xff]
        %v918 = vld [vmem:[%s903 + $0xa8] sm:$0xff]
        %v919 = vld [vmem:[%s903 + $0xb0] sm:$0xff]
        %v920 = vpack.c.bf16 %v905, %v904
        %v921 = vpack.c.bf16 %v907, %v906
        %v922 = vpack.c.bf16 %v909, %v908
        %v923 = vpack.c.bf16 %v911, %v910
        %v924 = vpack.c.bf16 %v913, %v912
        %v925 = vpack.c.bf16 %v915, %v914
        %v926 = vpack.c.bf16 %v917, %v916
        %v927 = vpack.c.bf16 %v919, %v918
        %s928 = scalar_lea.vmem %s1, 24
        %v929 = vld [vmem:[%s928] sm:$0xf]
        %v930 = vpack.c.bf16 %v929, %v929
        %v932 = vsel %vm268, %v920, 0
        %v935 = vsel %vm268, %v921, 0
        %v938 = vsel %vm268, %v922, 0
        %v941 = vsel %vm268, %v923, 0
        %v944 = vsel %vm268, %v924, 0
        %v947 = vsel %vm268, %v925, 0
        %v950 = vsel %vm268, %v926, 0
        %v953 = vsel %vm268, %v927, 0
        %v956 = vsel %vm293, %v930, 0
        %958 = vmatpush.bf16.msra.mxu0 0
        %959 = vmatpush.bf16.msra.mxu0 0
        %960 = vmatpush.bf16.msra.mxu0 0
        %961 = vmatpush.bf16.msra.mxu0 0
        %962 = vmatpush.bf16.msra.mxu0 0
        %963 = vmatpush.bf16.msra.mxu0 0
        %964 = vmatpush.bf16.msra.mxu0 0
        %965 = vmatpush.bf16.msra.mxu0 %v956
        %966 = vmatmul.bf16.gmra.mxu0 %v932
        %v967 = vpop.f32.mrf.mxu0
        %v968 = vadd.f32 0.0, %v967
        %v969 = vpop.f32.mrf.mxu0
        %v970 = vadd.f32 0.0, %v969
        %971 = vmatmul.bf16.gmra.mxu0 %v935
        %v972 = vpop.f32.mrf.mxu0
        %v973 = vadd.f32 0.0, %v972
        %v974 = vpop.f32.mrf.mxu0
        %v975 = vadd.f32 0.0, %v974
        %976 = vmatmul.bf16.gmra.mxu0 %v938
        %v977 = vpop.f32.mrf.mxu0
        %v978 = vadd.f32 0.0, %v977
        %v979 = vpop.f32.mrf.mxu0
        %v980 = vadd.f32 0.0, %v979
        %981 = vmatmul.bf16.gmra.mxu0 %v941
        %v982 = vpop.f32.mrf.mxu0
        %v983 = vadd.f32 0.0, %v982
        %v984 = vpop.f32.mrf.mxu0
        %v985 = vadd.f32 0.0, %v984
        %986 = vmatmul.bf16.gmra.mxu0 %v944
        %v987 = vpop.f32.mrf.mxu0
        %v988 = vadd.f32 0.0, %v987
        %v989 = vpop.f32.mrf.mxu0
        %v990 = vadd.f32 0.0, %v989
        %991 = vmatmul.bf16.gmra.mxu0 %v947
        %v992 = vpop.f32.mrf.mxu0
        %v993 = vadd.f32 0.0, %v992
        %v994 = vpop.f32.mrf.mxu0
        %v995 = vadd.f32 0.0, %v994
        %996 = vmatmul.bf16.gmra.mxu0 %v950
        %v997 = vpop.f32.mrf.mxu0
        %v998 = vadd.f32 0.0, %v997
        %v999 = vpop.f32.mrf.mxu0
        %v1000 = vadd.f32 0.0, %v999
        %1001 = vmatmul.bf16.gmra.mxu0 %v953
        %v1002 = vpop.f32.mrf.mxu0
        %v1003 = vadd.f32 0.0, %v1002
        %v1004 = vpop.f32.mrf.mxu0
        %v1005 = vadd.f32 0.0, %v1004
        %1006 = vdwg.mxu0
        %v1007 = vadd.f32 %v885, %v968
        %v1008 = vadd.f32 %v886, %v970
        %v1009 = vadd.f32 %v887, %v973
        %v1010 = vadd.f32 %v888, %v975
        %v1011 = vadd.f32 %v889, %v978
        %v1012 = vadd.f32 %v890, %v980
        %v1013 = vadd.f32 %v891, %v983
        %v1014 = vadd.f32 %v892, %v985
        %v1015 = vadd.f32 %v893, %v988
        %v1016 = vadd.f32 %v894, %v990
        %v1017 = vadd.f32 %v895, %v993
        %v1018 = vadd.f32 %v896, %v995
        %v1019 = vadd.f32 %v897, %v998
        %v1020 = vadd.f32 %v898, %v1000
        %v1021 = vadd.f32 %v899, %v1003
        %v1022 = vadd.f32 %v900, %v1005
        %v1023 = vld [vmem:[%s903 + $0x1] sm:$0xff]
        %v1024 = vld [vmem:[%s903 + $0x9] sm:$0xff]
        %v1025 = vld [vmem:[%s903 + $0x19] sm:$0xff]
        %v1026 = vld [vmem:[%s903 + $0x21] sm:$0xff]
        %v1027 = vld [vmem:[%s903 + $0x31] sm:$0xff]
        %v1028 = vld [vmem:[%s903 + $0x39] sm:$0xff]
        %v1029 = vld [vmem:[%s903 + $0x49] sm:$0xff]
        %v1030 = vld [vmem:[%s903 + $0x51] sm:$0xff]
        %v1031 = vld [vmem:[%s903 + $0x61] sm:$0xff]
        %v1032 = vld [vmem:[%s903 + $0x69] sm:$0xff]
        %v1033 = vld [vmem:[%s903 + $0x79] sm:$0xff]
        %v1034 = vld [vmem:[%s903 + $0x81] sm:$0xff]
        %v1035 = vld [vmem:[%s903 + $0x91] sm:$0xff]
        %v1036 = vld [vmem:[%s903 + $0x99] sm:$0xff]
        %v1037 = vld [vmem:[%s903 + $0xa9] sm:$0xff]
        %v1038 = vld [vmem:[%s903 + $0xb1] sm:$0xff]
        %v1039 = vpack.c.bf16 %v1024, %v1023
        %v1040 = vpack.c.bf16 %v1026, %v1025
        %v1041 = vpack.c.bf16 %v1028, %v1027
        %v1042 = vpack.c.bf16 %v1030, %v1029
        %v1043 = vpack.c.bf16 %v1032, %v1031
        %v1044 = vpack.c.bf16 %v1034, %v1033
        %v1045 = vpack.c.bf16 %v1036, %v1035
        %v1046 = vpack.c.bf16 %v1038, %v1037
        %s1047 = scalar_lea.vmem %s1, 28
        %v1048 = vld [vmem:[%s1047] sm:$0xf]
        %v1049 = vpack.c.bf16 %v1048, %v1048
        %v1051 = vsel %vm268, %v1039, 0
        %v1054 = vsel %vm268, %v1040, 0
        %v1057 = vsel %vm268, %v1041, 0
        %v1060 = vsel %vm268, %v1042, 0
        %v1063 = vsel %vm268, %v1043, 0
        %v1066 = vsel %vm268, %v1044, 0
        %v1069 = vsel %vm268, %v1045, 0
        %v1072 = vsel %vm268, %v1046, 0
        %v1075 = vsel %vm293, %v1049, 0
        %1077 = vmatpush.bf16.msra.mxu0 0
        %1078 = vmatpush.bf16.msra.mxu0 0
        %1079 = vmatpush.bf16.msra.mxu0 0
        %1080 = vmatpush.bf16.msra.mxu0 0
        %1081 = vmatpush.bf16.msra.mxu0 0
        %1082 = vmatpush.bf16.msra.mxu0 0
        %1083 = vmatpush.bf16.msra.mxu0 0
        %1084 = vmatpush.bf16.msra.mxu0 %v1075
        %1085 = vmatmul.bf16.gmra.mxu0 %v1051
        %v1086 = vpop.f32.mrf.mxu0
        %v1087 = vadd.f32 0.0, %v1086
        %v1088 = vpop.f32.mrf.mxu0
        %v1089 = vadd.f32 0.0, %v1088
        %1090 = vmatmul.bf16.gmra.mxu0 %v1054
        %v1091 = vpop.f32.mrf.mxu0
        %v1092 = vadd.f32 0.0, %v1091
        %v1093 = vpop.f32.mrf.mxu0
        %v1094 = vadd.f32 0.0, %v1093
        %1095 = vmatmul.bf16.gmra.mxu0 %v1057
        %v1096 = vpop.f32.mrf.mxu0
        %v1097 = vadd.f32 0.0, %v1096
        %v1098 = vpop.f32.mrf.mxu0
        %v1099 = vadd.f32 0.0, %v1098
        %1100 = vmatmul.bf16.gmra.mxu0 %v1060
        %v1101 = vpop.f32.mrf.mxu0
        %v1102 = vadd.f32 0.0, %v1101
        %v1103 = vpop.f32.mrf.mxu0
        %v1104 = vadd.f32 0.0, %v1103
        %1105 = vmatmul.bf16.gmra.mxu0 %v1063
        %v1106 = vpop.f32.mrf.mxu0
        %v1107 = vadd.f32 0.0, %v1106
        %v1108 = vpop.f32.mrf.mxu0
        %v1109 = vadd.f32 0.0, %v1108
        %1110 = vmatmul.bf16.gmra.mxu0 %v1066
        %v1111 = vpop.f32.mrf.mxu0
        %v1112 = vadd.f32 0.0, %v1111
        %v1113 = vpop.f32.mrf.mxu0
        %v1114 = vadd.f32 0.0, %v1113
        %1115 = vmatmul.bf16.gmra.mxu0 %v1069
        %v1116 = vpop.f32.mrf.mxu0
        %v1117 = vadd.f32 0.0, %v1116
        %v1118 = vpop.f32.mrf.mxu0
        %v1119 = vadd.f32 0.0, %v1118
        %1120 = vmatmul.bf16.gmra.mxu0 %v1072
        %v1121 = vpop.f32.mrf.mxu0
        %v1122 = vadd.f32 0.0, %v1121
        %v1123 = vpop.f32.mrf.mxu0
        %v1124 = vadd.f32 0.0, %v1123
        %1125 = vdwg.mxu0
        %v1126 = vadd.f32 %v1007, %v1087
        %v1127 = vadd.f32 %v1008, %v1089
        %v1128 = vadd.f32 %v1009, %v1092
        %v1129 = vadd.f32 %v1010, %v1094
        %v1130 = vadd.f32 %v1011, %v1097
        %v1131 = vadd.f32 %v1012, %v1099
        %v1132 = vadd.f32 %v1013, %v1102
        %v1133 = vadd.f32 %v1014, %v1104
        %v1134 = vadd.f32 %v1015, %v1107
        %v1135 = vadd.f32 %v1016, %v1109
        %v1136 = vadd.f32 %v1017, %v1112
        %v1137 = vadd.f32 %v1018, %v1114
        %v1138 = vadd.f32 %v1019, %v1117
        %v1139 = vadd.f32 %v1020, %v1119
        %v1140 = vadd.f32 %v1021, %v1122
        %v1141 = vadd.f32 %v1022, %v1124
        %v1142 = vld [vmem:[%s903 + $0x2] sm:$0xff]
        %v1143 = vld [vmem:[%s903 + $0xa] sm:$0xff]
        %v1144 = vld [vmem:[%s903 + $0x1a] sm:$0xff]
        %v1145 = vld [vmem:[%s903 + $0x22] sm:$0xff]
        %v1146 = vld [vmem:[%s903 + $0x32] sm:$0xff]
        %v1147 = vld [vmem:[%s903 + $0x3a] sm:$0xff]
        %v1148 = vld [vmem:[%s903 + $0x4a] sm:$0xff]
        %v1149 = vld [vmem:[%s903 + $0x52] sm:$0xff]
        %v1150 = vld [vmem:[%s903 + $0x62] sm:$0xff]
        %v1151 = vld [vmem:[%s903 + $0x6a] sm:$0xff]
        %v1152 = vld [vmem:[%s903 + $0x7a] sm:$0xff]
        %v1153 = vld [vmem:[%s903 + $0x82] sm:$0xff]
        %v1154 = vld [vmem:[%s903 + $0x92] sm:$0xff]
        %v1155 = vld [vmem:[%s903 + $0x9a] sm:$0xff]
        %v1156 = vld [vmem:[%s903 + $0xaa] sm:$0xff]
        %v1157 = vld [vmem:[%s903 + $0xb2] sm:$0xff]
        %v1158 = vpack.c.bf16 %v1143, %v1142
        %v1159 = vpack.c.bf16 %v1145, %v1144
        %v1160 = vpack.c.bf16 %v1147, %v1146
        %v1161 = vpack.c.bf16 %v1149, %v1148
        %v1162 = vpack.c.bf16 %v1151, %v1150
        %v1163 = vpack.c.bf16 %v1153, %v1152
        %v1164 = vpack.c.bf16 %v1155, %v1154
        %v1165 = vpack.c.bf16 %v1157, %v1156
        %s1166 = scalar_lea.vmem %s1, 32
        %v1167 = vld [vmem:[%s1166] sm:$0xf]
        %v1168 = vpack.c.bf16 %v1167, %v1167
        %v1170 = vsel %vm268, %v1158, 0
        %v1173 = vsel %vm268, %v1159, 0
        %v1176 = vsel %vm268, %v1160, 0
        %v1179 = vsel %vm268, %v1161, 0
        %v1182 = vsel %vm268, %v1162, 0
        %v1185 = vsel %vm268, %v1163, 0
        %v1188 = vsel %vm268, %v1164, 0
        %v1191 = vsel %vm268, %v1165, 0
        %v1194 = vsel %vm293, %v1168, 0
        %1196 = vmatpush.bf16.msra.mxu0 0
        %1197 = vmatpush.bf16.msra.mxu0 0
        %1198 = vmatpush.bf16.msra.mxu0 0
        %1199 = vmatpush.bf16.msra.mxu0 0
        %1200 = vmatpush.bf16.msra.mxu0 0
        %1201 = vmatpush.bf16.msra.mxu0 0
        %1202 = vmatpush.bf16.msra.mxu0 0
        %1203 = vmatpush.bf16.msra.mxu0 %v1194
        %1204 = vmatmul.bf16.gmra.mxu0 %v1170
        %v1205 = vpop.f32.mrf.mxu0
        %v1206 = vadd.f32 0.0, %v1205
        %v1207 = vpop.f32.mrf.mxu0
        %v1208 = vadd.f32 0.0, %v1207
        %1209 = vmatmul.bf16.gmra.mxu0 %v1173
        %v1210 = vpop.f32.mrf.mxu0
        %v1211 = vadd.f32 0.0, %v1210
        %v1212 = vpop.f32.mrf.mxu0
        %v1213 = vadd.f32 0.0, %v1212
        %1214 = vmatmul.bf16.gmra.mxu0 %v1176
        %v1215 = vpop.f32.mrf.mxu0
        %v1216 = vadd.f32 0.0, %v1215
        %v1217 = vpop.f32.mrf.mxu0
        %v1218 = vadd.f32 0.0, %v1217
        %1219 = vmatmul.bf16.gmra.mxu0 %v1179
        %v1220 = vpop.f32.mrf.mxu0
        %v1221 = vadd.f32 0.0, %v1220
        %v1222 = vpop.f32.mrf.mxu0
        %v1223 = vadd.f32 0.0, %v1222
        %1224 = vmatmul.bf16.gmra.mxu0 %v1182
        %v1225 = vpop.f32.mrf.mxu0
        %v1226 = vadd.f32 0.0, %v1225
        %v1227 = vpop.f32.mrf.mxu0
        %v1228 = vadd.f32 0.0, %v1227
        %1229 = vmatmul.bf16.gmra.mxu0 %v1185
        %v1230 = vpop.f32.mrf.mxu0
        %v1231 = vadd.f32 0.0, %v1230
        %v1232 = vpop.f32.mrf.mxu0
        %v1233 = vadd.f32 0.0, %v1232
        %1234 = vmatmul.bf16.gmra.mxu0 %v1188
        %v1235 = vpop.f32.mrf.mxu0
        %v1236 = vadd.f32 0.0, %v1235
        %v1237 = vpop.f32.mrf.mxu0
        %v1238 = vadd.f32 0.0, %v1237
        %1239 = vmatmul.bf16.gmra.mxu0 %v1191
        %v1240 = vpop.f32.mrf.mxu0
        %v1241 = vadd.f32 0.0, %v1240
        %v1242 = vpop.f32.mrf.mxu0
        %v1243 = vadd.f32 0.0, %v1242
        %1244 = vdwg.mxu0
        %v1245 = vadd.f32 %v1126, %v1206
        %v1246 = vadd.f32 %v1127, %v1208
        %v1247 = vadd.f32 %v1128, %v1211
        %v1248 = vadd.f32 %v1129, %v1213
        %v1249 = vadd.f32 %v1130, %v1216
        %v1250 = vadd.f32 %v1131, %v1218
        %v1251 = vadd.f32 %v1132, %v1221
        %v1252 = vadd.f32 %v1133, %v1223
        %v1253 = vadd.f32 %v1134, %v1226
        %v1254 = vadd.f32 %v1135, %v1228
        %v1255 = vadd.f32 %v1136, %v1231
        %v1256 = vadd.f32 %v1137, %v1233
        %v1257 = vadd.f32 %v1138, %v1236
        %v1258 = vadd.f32 %v1139, %v1238
        %v1259 = vadd.f32 %v1140, %v1241
        %v1260 = vadd.f32 %v1141, %v1243
        %v1261 = vld [vmem:[%s2] sm:$0x1]
        %v1263 = vperm.slane %v1261, 0
        %v1265 = vmul.f32 %v1245, %v1263
        %v1266 = vmul.f32 %v1246, %v1263
        %v1267 = vmul.f32 %v1247, %v1263
        %v1268 = vmul.f32 %v1248, %v1263
        %v1269 = vmul.f32 %v1249, %v1263
        %v1270 = vmul.f32 %v1250, %v1263
        %v1271 = vmul.f32 %v1251, %v1263
        %v1272 = vmul.f32 %v1252, %v1263
        %v1273 = vmul.f32 %v1253, %v1263
        %v1274 = vmul.f32 %v1254, %v1263
        %v1275 = vmul.f32 %v1255, %v1263
        %v1276 = vmul.f32 %v1256, %v1263
        %v1277 = vmul.f32 %v1257, %v1263
        %v1278 = vmul.f32 %v1258, %v1263
        %v1279 = vmul.f32 %v1259, %v1263
        %v1280 = vmul.f32 %v1260, %v1263
        %v1281 = vld [vmem:[%s3] sm:$0x1]
        %v1283 = vperm.slane %v1281, 0
        %v1285 = vadd.f32 %v1265, %v1283
        %v1286 = vadd.f32 %v1266, %v1283
        %v1287 = vadd.f32 %v1267, %v1283
        %v1288 = vadd.f32 %v1268, %v1283
        %v1289 = vadd.f32 %v1269, %v1283
        %v1290 = vadd.f32 %v1270, %v1283
        %v1291 = vadd.f32 %v1271, %v1283
        %v1292 = vadd.f32 %v1272, %v1283
        %v1293 = vadd.f32 %v1273, %v1283
        %v1294 = vadd.f32 %v1274, %v1283
        %v1295 = vadd.f32 %v1275, %v1283
        %v1296 = vadd.f32 %v1276, %v1283
        %v1297 = vadd.f32 %v1277, %v1283
        %v1298 = vadd.f32 %v1278, %v1283
        %v1299 = vadd.f32 %v1279, %v1283
        %v1300 = vadd.f32 %v1280, %v1283
        %1301 = vst [vmem:[%s204] sm:$0xff] %v1285
        %1302 = vst [vmem:[%s204 + $0x8] sm:$0xff] %v1286
        %1303 = vst [vmem:[%s204 + $0x10] sm:$0xff] %v1287
        %1304 = vst [vmem:[%s204 + $0x18] sm:$0xff] %v1288
        %1305 = vst [vmem:[%s204 + $0x20] sm:$0xff] %v1289
        %1306 = vst [vmem:[%s204 + $0x28] sm:$0xff] %v1290
        %1307 = vst [vmem:[%s204 + $0x30] sm:$0xff] %v1291
        %1308 = vst [vmem:[%s204 + $0x38] sm:$0xff] %v1292
        %1309 = vst [vmem:[%s204 + $0x40] sm:$0xff] %v1293
        %1310 = vst [vmem:[%s204 + $0x48] sm:$0xff] %v1294
        %1311 = vst [vmem:[%s204 + $0x50] sm:$0xff] %v1295
        %1312 = vst [vmem:[%s204 + $0x58] sm:$0xff] %v1296
        %1313 = vst [vmem:[%s204 + $0x60] sm:$0xff] %v1297
        %1314 = vst [vmem:[%s204 + $0x68] sm:$0xff] %v1298
        %1315 = vst [vmem:[%s204 + $0x70] sm:$0xff] %v1299
        %1316 = vst [vmem:[%s204 + $0x78] sm:$0xff] %v1300
        %s1317 = sand.u32 %s129, 1
        %s1318 = scalar_lea.sflag [#allocation3], %s1317
        %s1319 = sand.u32 %s129, 1
        %s1320 = smul.addr %s1319, 128
        %s1321 = scalar_lea.vmem [#allocation2], %s1320
        // Predicated region
        $region37: #{tpu_custom_call.1} parent=35 // pred_check
          %p1322 = pneg %p139
        $region38: #{tpu_custom_call.1} parent=35 // pred_check_branch
          %1324 = sbr.rel (%p1322) target = $region40
        $region39: #{tpu_custom_call.1} parent=35 // pred_region
          %s1325 = smul.u32 8, %s23
          %1327 = vsyncadd %s1318, 0
          %s1328 = smul.addr %s1325, 2
          %s1329 = smul.addr %s22, 32
          %s1330 = sadd.s32 %s1328, %s1329
          %s1331 = smul.addr %s1330, 8
          %s1332 = scalar_lea.hbm %s4, %s1331
          %s1333 = sshll.u32 %s1321, 4
          %s1334 = int_to_ptr.vmem [resolvable:$true] %s1333
          %s1335 = sshll.u32 %s1332, 4
          %s1336 = int_to_ptr.hbm [resolvable:$true] %s1335
          %1341 = dma.vmem_to_hbm [thread:$0]  %s1334, 2048, %s1336, %s1318, 128, 128, 8
        $region40: #{tpu_custom_call.1} parent=35 // pred_fallthru
          _
      $region36: #{tpu_custom_call.1} parent=5 // pred_fallthru
        _
      %p1342 = scmp.le.s32.totalorder 2, %s13
      // Predicated region
      $region41: #{tpu_custom_call.1} parent=5 // pred_check
        %p1343 = pneg %p1342
      $region42: #{tpu_custom_call.1} parent=5 // pred_check_branch
        %1345 = sbr.rel (%p1343) target = $region44
      $region43: #{tpu_custom_call.1} parent=5 // pred_region
        %s1346 = ssub.s32 %s13, 2
        // Predicated region
        $region45: #{tpu_custom_call.1} parent=43 // pred_check
          %p1347 = pneg %p145
        $region46: #{tpu_custom_call.1} parent=43 // pred_check_branch
          %1349 = sbr.rel (%p1347) target = $region48
        $region47: #{tpu_custom_call.1} parent=43 // pred_region
          %s1350 = sand.u32 %s130, 1
          %s1351 = scalar_lea.sflag [#allocation3], %s1350
          %s1352 = sand.u32 %s130, 1
          %s1353 = smul.addr %s1352, 128
          %s1354 = scalar_lea.vmem [#allocation2], %s1353
          %1356 = dma.done %s1351, 2048
        $region48: #{tpu_custom_call.1} parent=43 // pred_fallthru
          _
      $region44: #{tpu_custom_call.1} parent=5 // pred_fallthru
        _
    $region6: #{tpu_custom_call.1} parent=1 // loop_footer
      %s17 = sadd.s32 1, %s13
    $region7: #{tpu_custom_call.1} parent=1 // loop_footer_branch
      %12 = sbr.rel target = $region3
    $region8: #{tpu_custom_call.1} parent=1 // loop_exit
      _
    %1357 = vsyncpa [#allocation3], 1
    %s1358 = scalar_lea.sflag [#allocation3], 1
    %1359 = vsyncpa %s1358, 1

</llo_original>
